<compile_context>
chip_gen: v7x
topology: tpu7x:2x2x1
jax: 0.10.0
libtpu: 0.0.40
codegen_flags: <defaults>
</compile_context>

<pallas_src>
import functools

import jax
import jax.numpy as jnp
from jax import lax
from jax.experimental import pallas as pl
from jax.experimental.pallas import tpu as pltpu

NEURON = 40
LAYERS = [3] + [NEURON] * 7 + [4]
N_LAYERS = len(LAYERS) - 1          # 8 Linear layers
PAD = 128                           # lane-padded hidden/output feature width
X_IN = 16                           # padded input width (3 -> 16 = one bf16 sublane tile)


def _cdiv(a, b):
    return -(-a // b)


def _mlp_kernel(x_ref, w_ref, b_ref, o_ref, *, sub, act_dtype):
    """Whole 8-layer MLP for one (tm, X_IN) batch tile.

    x_ref: (tm, X_IN) f32          w_ref: (N_LAYERS, PAD, PAD) compute dtype (resident)
    b_ref: (N_LAYERS, PAD) f32     o_ref: (tm, PAD) f32
    The tile is processed by an inner loop over `sub`-row sub-tiles; each
    sub-tile is split into two independent row chains so chain B's layer-i
    matmul (MXU) can overlap chain A's layer-i tanh (EUP).
    """
    cdt = w_ref.dtype
    tm = x_ref.shape[0]
    in_dim = x_ref.shape[1]
    half = sub // 2
    n_sub = tm // sub

    def sub_tile(j, carry):
        r0 = pl.multiple_of(j * sub, sub)
        r1 = pl.multiple_of(j * sub + half, half)

        # ---- layer 0: (half, X_IN) x (X_IN, PAD); f32 accumulation ----
        w0 = w_ref[0, :in_dim, :]                     # (X_IN, PAD), tile-aligned slice
        b0 = b_ref[0:1, :]                            # (1, PAD) f32
        xa = x_ref[pl.ds(r0, half), :].astype(cdt)
        xb = x_ref[pl.ds(r1, half), :].astype(cdt)
        za = jnp.dot(xa, w0, preferred_element_type=jnp.float32) + b0
        zb = jnp.dot(xb, w0, preferred_element_type=jnp.float32) + b0
        ha = jnp.tanh(za.astype(act_dtype)).astype(cdt)
        hb = jnp.tanh(zb.astype(act_dtype)).astype(cdt)

        # ---- hidden layers 1..6: two interleaved matmul->tanh chains ----
        for i in range(1, N_LAYERS - 1):
            wi = w_ref[i]                              # (PAD, PAD), already compute dtype
            bi = b_ref[i:i + 1, :]                     # (1, PAD) f32
            za = jnp.dot(ha, wi, preferred_element_type=jnp.float32) + bi
            zb = jnp.dot(hb, wi, preferred_element_type=jnp.float32) + bi
            ha = jnp.tanh(za.astype(act_dtype)).astype(cdt)
            hb = jnp.tanh(zb.astype(act_dtype)).astype(cdt)

        # ---- final layer: no activation, f32 output ----
        wl = w_ref[N_LAYERS - 1]
        bl = b_ref[N_LAYERS - 1:N_LAYERS, :]
        o_ref[pl.ds(r0, half), :] = (
            jnp.dot(ha, wl, preferred_element_type=jnp.float32) + bl)
        o_ref[pl.ds(r1, half), :] = (
            jnp.dot(hb, wl, preferred_element_type=jnp.float32) + bl)
        return carry

    lax.fori_loop(0, n_sub, sub_tile, 0, unroll=False)


def pack_params(weights, biases, compute_dtype=jnp.float32):
    """Pad + stack all layer params once, pre-cast to the compute dtype.

    weights[i]: (in_i, out_i), biases[i]: (out_i,).
    Returns w_stack (N_LAYERS, PAD, PAD) compute_dtype, b_stack (N_LAYERS, PAD) f32.
    (Bias stays f32: it is added to the f32 MXU accumulator inside the kernel.)
    """
    w_stack = jnp.zeros((N_LAYERS, PAD, PAD), jnp.float32)
    b_stack = jnp.zeros((N_LAYERS, PAD), jnp.float32)
    for i, (w, b) in enumerate(zip(weights, biases)):
        din, dout = w.shape
        w_stack = w_stack.at[i, :din, :dout].set(w.astype(jnp.float32))
        b_stack = b_stack.at[i, :dout].set(b.astype(jnp.float32))
    return w_stack.astype(compute_dtype), b_stack


def _pick_tiles(n, tm_max, sub):
    """Choose (tm, n_pad): tm multiple of sub, tm <= tm_max, grid >= 2 when possible."""
    tm_max = max(sub, (tm_max // sub) * sub)
    n_sub = _cdiv(n, sub)
    if n_sub < 2:
        return sub, sub
    tiles = max(2, _cdiv(n_sub * sub, tm_max))        # grid steps (>= 2 for megacore)
    per_tile = _cdiv(n_sub, tiles)
    tm = per_tile * sub
    return tm, tiles * tm


@functools.partial(jax.jit,
                   static_argnames=("tm", "sub", "compute_dtype", "tanh_in_f32"))
def pinn_forward(x, w_stack, b_stack, *, tm=1024, sub=None,
                 compute_dtype=jnp.float32, tanh_in_f32=False):
    """x: (N, 3) f32 -> (N, 4) f32.

    tm: max batch rows per grid step (auto-shrunk for small N, keeps grid>=2).
    sub: inner sub-tile rows (default 128 for f32, 256 for bf16).
    compute_dtype: MXU operand dtype; w_stack must already be in this dtype.
    tanh_in_f32: keep tanh in f32 (recommended on v5e; bf16 tanh is emulated there).
    """
    N, in_dim = x.shape
    cdt = jnp.dtype(compute_dtype)
    if w_stack.dtype != cdt:
        raise ValueError(f"w_stack dtype {w_stack.dtype} != compute_dtype {cdt}; "
                         "pack_params(..., compute_dtype) must match.")
    if in_dim > X_IN:
        raise ValueError(f"input dim {in_dim} > padded width {X_IN}")
    if sub is None:
        sub = 128 if cdt == jnp.dtype(jnp.float32) else 256
    if sub % 32 != 0:
        raise ValueError(f"sub={sub} must be a multiple of 32")

    act_dtype = jnp.float32 if (cdt == jnp.dtype(jnp.float32) or tanh_in_f32) else cdt
    tm, n_pad = _pick_tiles(N, tm, sub)
    grid = n_pad // tm

    # Row/col zero-padding is tanh(0)-safe; padded rows are sliced off below.
    x_pad = jnp.pad(x, ((0, n_pad - N), (0, X_IN - in_dim)))   # (n_pad, X_IN)

    cost = pl.CostEstimate(
        flops=2 * n_pad * (X_IN * PAD + (N_LAYERS - 1) * PAD * PAD),
        transcendentals=n_pad * (N_LAYERS - 1) * PAD,
        bytes_accessed=(x_pad.size * 4 + n_pad * PAD * 4
                        + w_stack.size * w_stack.dtype.itemsize + b_stack.size * 4),
    )

    kernel = functools.partial(_mlp_kernel, sub=sub, act_dtype=act_dtype)
    out = pl.pallas_call(
        kernel,
        out_shape=jax.ShapeDtypeStruct((n_pad, PAD), jnp.float32),
        grid_spec=pltpu.PrefetchScalarGridSpec(
            num_scalar_prefetch=0,
            grid=(grid,),
            in_specs=[
                pl.BlockSpec((tm, X_IN), lambda i: (i, 0)),
                # constant index_map -> weight/bias blocks stay resident in VMEM
                pl.BlockSpec((N_LAYERS, PAD, PAD), lambda i: (0, 0, 0)),
                pl.BlockSpec((N_LAYERS, PAD), lambda i: (0, 0)),
            ],
            out_specs=pl.BlockSpec((tm, PAD), lambda i: (i, 0)),
        ),
        compiler_params=pltpu.CompilerParams(
            dimension_semantics=("parallel",),
        ),
        cost_estimate=cost,
    )(x_pad, w_stack, b_stack)

    # Only the first 4 lanes / N rows are real; kernel output stays lane-dense.
    return out[:N, :LAYERS[-1]]


def init_params(key):
    """Xavier-uniform weights (torch W:(out,in), stored transposed), zero biases."""
    weights, biases = [], []
    for i in range(N_LAYERS):
        fan_in, fan_out = LAYERS[i], LAYERS[i + 1]
        key, sub = jax.random.split(key)
        a = (6.0 / (fan_in + fan_out)) ** 0.5
        w_torch = jax.random.uniform(sub, (fan_out, fan_in), jnp.float32, -a, a)
        weights.append(w_torch.T)                    # kernel computes x @ W, W:(in,out)
        biases.append(jnp.zeros((fan_out,), jnp.float32))
    return weights, biases


def reference(x, weights, biases):
    h = x
    for i in range(N_LAYERS - 1):
        h = jnp.tanh(h @ weights[i] + biases[i])
    return h @ weights[-1] + biases[-1]


if __name__ == "__main__":
    key = jax.random.PRNGKey(0)
    key, wk = jax.random.split(key)
    weights, biases = init_params(wk)

    # ---- f32 path: exact semantics vs the PyTorch-style reference ----
    w32, b32 = pack_params(weights, biases, jnp.float32)
    N1 = 200                                  # deliberately NOT a tile multiple
    key, xk = jax.random.split(key)
    x1 = jax.random.uniform(xk, (N1, 3), jnp.float32)   # normalized coords in [0,1)
    out1 = jax.block_until_ready(pinn_forward(x1, w32, b32))
    ref1 = reference(x1, weights, biases)
    assert out1.shape == (N1, 4), out1.shape
    assert jnp.allclose(out1, ref1, atol=1e-4, rtol=1e-4), "f32 mismatch vs reference"

    # ---- bf16 perf path (v6e/v7x): pre-cast bf16 weights, big tiles, bf16 tanh ----
    w16, b16 = pack_params(weights, biases, jnp.bfloat16)
    N2 = 1536
    key, xk2 = jax.random.split(key)
    x2 = jax.random.uniform(xk2, (N2, 3), jnp.float32)
    out2 = jax.block_until_ready(
        pinn_forward(x2, w16, b16, compute_dtype=jnp.bfloat16))
    ref2 = reference(x2, weights, biases)
    assert out2.shape == (N2, 4), out2.shape
    max_err = float(jnp.max(jnp.abs(out2 - ref2)))
    assert max_err < 1e-1, f"bf16 path error too large: {max_err}"

    # ---- v5e-style bf16 path: bf16 MXU operands, tanh kept in f32 ----
    out3 = jax.block_until_ready(
        pinn_forward(x2, w16, b16, compute_dtype=jnp.bfloat16, tanh_in_f32=True))
    max_err3 = float(jnp.max(jnp.abs(out3 - ref2)))
    assert max_err3 < 1e-1, f"bf16(f32-tanh) path error too large: {max_err3}"

    print("KERNEL_OK")
</pallas_src>

<mosaic_0001>
module attributes {stable_mosaic.version = 11 : i64} {
  func.func @_mlp_kernel(%arg0: i32, %arg1: memref<128x16xf32, #tpu.memory_space<vmem>>, %arg2: memref<8x128x128xf32, #tpu.memory_space<vmem>>, %arg3: memref<8x128xf32, #tpu.memory_space<vmem>>, %arg4: memref<128x128xf32, #tpu.memory_space<vmem>>) attributes {dimension_semantics = [#tpu.dimension_semantics<parallel>], iteration_bounds = array<i64: 2>, scalar_prefetch = 0 : i64, scratch_operands = 0 : i64, tpu.core_type = #tpu.core_type<tc>, window_params = [{transform_indices = @transform_0, window_bounds = array<i64: 128, 16>}, {pipeline_mode = #tpu.pipeline_mode<synchronous>, transform_indices = @transform_1, window_bounds = array<i64: 8, 128, 128>}, {pipeline_mode = #tpu.pipeline_mode<synchronous>, transform_indices = @transform_2, window_bounds = array<i64: 8, 128>}, {transform_indices = @transform_3, window_bounds = array<i64: 128, 128>}]} {
    %c0_i32 = arith.constant 0 : i32
    %c128_i32 = arith.constant 128 : i32
    %0 = arith.muli %c0_i32, %c128_i32 : i32
    %1 = tpu.assume_multiple %0, 128 : i32
    %c128_i32_0 = arith.constant 128 : i32
    %2 = arith.muli %c0_i32, %c128_i32_0 : i32
    %c64_i32 = arith.constant 64 : i32
    %3 = arith.addi %2, %c64_i32 : i32
    %4 = tpu.assume_multiple %3, 64 : i32
    %c0 = arith.constant 0 : index
    %c0_1 = arith.constant 0 : index
    %c0_2 = arith.constant 0 : index
    %5 = vector.load %arg2[%c0, %c0_1, %c0_2] : memref<8x128x128xf32, #tpu.memory_space<vmem>>, vector<1x16x128xf32>
    %6 = vector.shape_cast %5 : vector<1x16x128xf32> to vector<16x128xf32>
    %c0_3 = arith.constant 0 : index
    %c0_4 = arith.constant 0 : index
    %7 = vector.load %arg3[%c0_3, %c0_4] : memref<8x128xf32, #tpu.memory_space<vmem>>, vector<1x128xf32>
    %8 = arith.index_cast %1 : i32 to index
    %c0_5 = arith.constant 0 : index
    %9 = vector.load %arg1[%8, %c0_5] : memref<128x16xf32, #tpu.memory_space<vmem>>, vector<64x16xf32>
    %10 = arith.index_cast %4 : i32 to index
    %c0_6 = arith.constant 0 : index
    %11 = vector.load %arg1[%10, %c0_6] : memref<128x16xf32, #tpu.memory_space<vmem>>, vector<64x16xf32>
    %cst = arith.constant dense<0.000000e+00> : vector<64x128xf32>
    %12 = tpu.matmul %9, %6, %cst {dimension_numbers = #tpu.dot_dimension_numbers<[1], [0], [0], [1], [0, 0, 1, 1], [], []>} : vector<64x16xf32>, vector<16x128xf32>, vector<64x128xf32> -> vector<64x128xf32>
    %13 = vector.broadcast %7 : vector<1x128xf32> to vector<64x128xf32>
    %14 = arith.addf %12, %13 : vector<64x128xf32>
    %cst_7 = arith.constant dense<0.000000e+00> : vector<64x128xf32>
    %15 = tpu.matmul %11, %6, %cst_7 {dimension_numbers = #tpu.dot_dimension_numbers<[1], [0], [0], [1], [0, 0, 1, 1], [], []>} : vector<64x16xf32>, vector<16x128xf32>, vector<64x128xf32> -> vector<64x128xf32>
    %16 = vector.broadcast %7 : vector<1x128xf32> to vector<64x128xf32>
    %17 = arith.addf %15, %16 : vector<64x128xf32>
    %18 = math.tanh %14 : vector<64x128xf32>
    %19 = math.tanh %17 : vector<64x128xf32>
    %c1 = arith.constant 1 : index
    %c0_8 = arith.constant 0 : index
    %c0_9 = arith.constant 0 : index
    %20 = vector.load %arg2[%c1, %c0_8, %c0_9] : memref<8x128x128xf32, #tpu.memory_space<vmem>>, vector<1x128x128xf32>
    %21 = vector.shape_cast %20 : vector<1x128x128xf32> to vector<128x128xf32>
    %c1_10 = arith.constant 1 : index
    %c0_11 = arith.constant 0 : index
    %22 = vector.load %arg3[%c1_10, %c0_11] : memref<8x128xf32, #tpu.memory_space<vmem>>, vector<1x128xf32>
    %cst_12 = arith.constant dense<0.000000e+00> : vector<64x128xf32>
    %23 = tpu.matmul %18, %21, %cst_12 {dimension_numbers = #tpu.dot_dimension_numbers<[1], [0], [0], [1], [0, 0, 1, 1], [], []>} : vector<64x128xf32>, vector<128x128xf32>, vector<64x128xf32> -> vector<64x128xf32>
    %24 = vector.broadcast %22 : vector<1x128xf32> to vector<64x128xf32>
    %25 = arith.addf %23, %24 : vector<64x128xf32>
    %cst_13 = arith.constant dense<0.000000e+00> : vector<64x128xf32>
    %26 = tpu.matmul %19, %21, %cst_13 {dimension_numbers = #tpu.dot_dimension_numbers<[1], [0], [0], [1], [0, 0, 1, 1], [], []>} : vector<64x128xf32>, vector<128x128xf32>, vector<64x128xf32> -> vector<64x128xf32>
    %27 = vector.broadcast %22 : vector<1x128xf32> to vector<64x128xf32>
    %28 = arith.addf %26, %27 : vector<64x128xf32>
    %29 = math.tanh %25 : vector<64x128xf32>
    %30 = math.tanh %28 : vector<64x128xf32>
    %c2 = arith.constant 2 : index
    %c0_14 = arith.constant 0 : index
    %c0_15 = arith.constant 0 : index
    %31 = vector.load %arg2[%c2, %c0_14, %c0_15] : memref<8x128x128xf32, #tpu.memory_space<vmem>>, vector<1x128x128xf32>
    %32 = vector.shape_cast %31 : vector<1x128x128xf32> to vector<128x128xf32>
    %c2_16 = arith.constant 2 : index
    %c0_17 = arith.constant 0 : index
    %33 = vector.load %arg3[%c2_16, %c0_17] : memref<8x128xf32, #tpu.memory_space<vmem>>, vector<1x128xf32>
    %cst_18 = arith.constant dense<0.000000e+00> : vector<64x128xf32>
    %34 = tpu.matmul %29, %32, %cst_18 {dimension_numbers = #tpu.dot_dimension_numbers<[1], [0], [0], [1], [0, 0, 1, 1], [], []>} : vector<64x128xf32>, vector<128x128xf32>, vector<64x128xf32> -> vector<64x128xf32>
    %35 = vector.broadcast %33 : vector<1x128xf32> to vector<64x128xf32>
    %36 = arith.addf %34, %35 : vector<64x128xf32>
    %cst_19 = arith.constant dense<0.000000e+00> : vector<64x128xf32>
    %37 = tpu.matmul %30, %32, %cst_19 {dimension_numbers = #tpu.dot_dimension_numbers<[1], [0], [0], [1], [0, 0, 1, 1], [], []>} : vector<64x128xf32>, vector<128x128xf32>, vector<64x128xf32> -> vector<64x128xf32>
    %38 = vector.broadcast %33 : vector<1x128xf32> to vector<64x128xf32>
    %39 = arith.addf %37, %38 : vector<64x128xf32>
    %40 = math.tanh %36 : vector<64x128xf32>
    %41 = math.tanh %39 : vector<64x128xf32>
    %c3 = arith.constant 3 : index
    %c0_20 = arith.constant 0 : index
    %c0_21 = arith.constant 0 : index
    %42 = vector.load %arg2[%c3, %c0_20, %c0_21] : memref<8x128x128xf32, #tpu.memory_space<vmem>>, vector<1x128x128xf32>
    %43 = vector.shape_cast %42 : vector<1x128x128xf32> to vector<128x128xf32>
    %c3_22 = arith.constant 3 : index
    %c0_23 = arith.constant 0 : index
    %44 = vector.load %arg3[%c3_22, %c0_23] : memref<8x128xf32, #tpu.memory_space<vmem>>, vector<1x128xf32>
    %cst_24 = arith.constant dense<0.000000e+00> : vector<64x128xf32>
    %45 = tpu.matmul %40, %43, %cst_24 {dimension_numbers = #tpu.dot_dimension_numbers<[1], [0], [0], [1], [0, 0, 1, 1], [], []>} : vector<64x128xf32>, vector<128x128xf32>, vector<64x128xf32> -> vector<64x128xf32>
    %46 = vector.broadcast %44 : vector<1x128xf32> to vector<64x128xf32>
    %47 = arith.addf %45, %46 : vector<64x128xf32>
    %cst_25 = arith.constant dense<0.000000e+00> : vector<64x128xf32>
    %48 = tpu.matmul %41, %43, %cst_25 {dimension_numbers = #tpu.dot_dimension_numbers<[1], [0], [0], [1], [0, 0, 1, 1], [], []>} : vector<64x128xf32>, vector<128x128xf32>, vector<64x128xf32> -> vector<64x128xf32>
    %49 = vector.broadcast %44 : vector<1x128xf32> to vector<64x128xf32>
    %50 = arith.addf %48, %49 : vector<64x128xf32>
    %51 = math.tanh %47 : vector<64x128xf32>
    %52 = math.tanh %50 : vector<64x128xf32>
    %c4 = arith.constant 4 : index
    %c0_26 = arith.constant 0 : index
    %c0_27 = arith.constant 0 : index
    %53 = vector.load %arg2[%c4, %c0_26, %c0_27] : memref<8x128x128xf32, #tpu.memory_space<vmem>>, vector<1x128x128xf32>
    %54 = vector.shape_cast %53 : vector<1x128x128xf32> to vector<128x128xf32>
    %c4_28 = arith.constant 4 : index
    %c0_29 = arith.constant 0 : index
    %55 = vector.load %arg3[%c4_28, %c0_29] : memref<8x128xf32, #tpu.memory_space<vmem>>, vector<1x128xf32>
    %cst_30 = arith.constant dense<0.000000e+00> : vector<64x128xf32>
    %56 = tpu.matmul %51, %54, %cst_30 {dimension_numbers = #tpu.dot_dimension_numbers<[1], [0], [0], [1], [0, 0, 1, 1], [], []>} : vector<64x128xf32>, vector<128x128xf32>, vector<64x128xf32> -> vector<64x128xf32>
    %57 = vector.broadcast %55 : vector<1x128xf32> to vector<64x128xf32>
    %58 = arith.addf %56, %57 : vector<64x128xf32>
    %cst_31 = arith.constant dense<0.000000e+00> : vector<64x128xf32>
    %59 = tpu.matmul %52, %54, %cst_31 {dimension_numbers = #tpu.dot_dimension_numbers<[1], [0], [0], [1], [0, 0, 1, 1], [], []>} : vector<64x128xf32>, vector<128x128xf32>, vector<64x128xf32> -> vector<64x128xf32>
    %60 = vector.broadcast %55 : vector<1x128xf32> to vector<64x128xf32>
    %61 = arith.addf %59, %60 : vector<64x128xf32>
    %62 = math.tanh %58 : vector<64x128xf32>
    %63 = math.tanh %61 : vector<64x128xf32>
    %c5 = arith.constant 5 : index
    %c0_32 = arith.constant 0 : index
    %c0_33 = arith.constant 0 : index
    %64 = vector.load %arg2[%c5, %c0_32, %c0_33] : memref<8x128x128xf32, #tpu.memory_space<vmem>>, vector<1x128x128xf32>
    %65 = vector.shape_cast %64 : vector<1x128x128xf32> to vector<128x128xf32>
    %c5_34 = arith.constant 5 : index
    %c0_35 = arith.constant 0 : index
    %66 = vector.load %arg3[%c5_34, %c0_35] : memref<8x128xf32, #tpu.memory_space<vmem>>, vector<1x128xf32>
    %cst_36 = arith.constant dense<0.000000e+00> : vector<64x128xf32>
    %67 = tpu.matmul %62, %65, %cst_36 {dimension_numbers = #tpu.dot_dimension_numbers<[1], [0], [0], [1], [0, 0, 1, 1], [], []>} : vector<64x128xf32>, vector<128x128xf32>, vector<64x128xf32> -> vector<64x128xf32>
    %68 = vector.broadcast %66 : vector<1x128xf32> to vector<64x128xf32>
    %69 = arith.addf %67, %68 : vector<64x128xf32>
    %cst_37 = arith.constant dense<0.000000e+00> : vector<64x128xf32>
    %70 = tpu.matmul %63, %65, %cst_37 {dimension_numbers = #tpu.dot_dimension_numbers<[1], [0], [0], [1], [0, 0, 1, 1], [], []>} : vector<64x128xf32>, vector<128x128xf32>, vector<64x128xf32> -> vector<64x128xf32>
    %71 = vector.broadcast %66 : vector<1x128xf32> to vector<64x128xf32>
    %72 = arith.addf %70, %71 : vector<64x128xf32>
    %73 = math.tanh %69 : vector<64x128xf32>
    %74 = math.tanh %72 : vector<64x128xf32>
    %c6 = arith.constant 6 : index
    %c0_38 = arith.constant 0 : index
    %c0_39 = arith.constant 0 : index
    %75 = vector.load %arg2[%c6, %c0_38, %c0_39] : memref<8x128x128xf32, #tpu.memory_space<vmem>>, vector<1x128x128xf32>
    %76 = vector.shape_cast %75 : vector<1x128x128xf32> to vector<128x128xf32>
    %c6_40 = arith.constant 6 : index
    %c0_41 = arith.constant 0 : index
    %77 = vector.load %arg3[%c6_40, %c0_41] : memref<8x128xf32, #tpu.memory_space<vmem>>, vector<1x128xf32>
    %cst_42 = arith.constant dense<0.000000e+00> : vector<64x128xf32>
    %78 = tpu.matmul %73, %76, %cst_42 {dimension_numbers = #tpu.dot_dimension_numbers<[1], [0], [0], [1], [0, 0, 1, 1], [], []>} : vector<64x128xf32>, vector<128x128xf32>, vector<64x128xf32> -> vector<64x128xf32>
    %79 = vector.broadcast %77 : vector<1x128xf32> to vector<64x128xf32>
    %80 = arith.addf %78, %79 : vector<64x128xf32>
    %cst_43 = arith.constant dense<0.000000e+00> : vector<64x128xf32>
    %81 = tpu.matmul %74, %76, %cst_43 {dimension_numbers = #tpu.dot_dimension_numbers<[1], [0], [0], [1], [0, 0, 1, 1], [], []>} : vector<64x128xf32>, vector<128x128xf32>, vector<64x128xf32> -> vector<64x128xf32>
    %82 = vector.broadcast %77 : vector<1x128xf32> to vector<64x128xf32>
    %83 = arith.addf %81, %82 : vector<64x128xf32>
    %84 = math.tanh %80 : vector<64x128xf32>
    %85 = math.tanh %83 : vector<64x128xf32>
    %c7 = arith.constant 7 : index
    %c0_44 = arith.constant 0 : index
    %c0_45 = arith.constant 0 : index
    %86 = vector.load %arg2[%c7, %c0_44, %c0_45] : memref<8x128x128xf32, #tpu.memory_space<vmem>>, vector<1x128x128xf32>
    %87 = vector.shape_cast %86 : vector<1x128x128xf32> to vector<128x128xf32>
    %c7_46 = arith.constant 7 : index
    %c0_47 = arith.constant 0 : index
    %88 = vector.load %arg3[%c7_46, %c0_47] : memref<8x128xf32, #tpu.memory_space<vmem>>, vector<1x128xf32>
    %cst_48 = arith.constant dense<0.000000e+00> : vector<64x128xf32>
    %89 = tpu.matmul %84, %87, %cst_48 {dimension_numbers = #tpu.dot_dimension_numbers<[1], [0], [0], [1], [0, 0, 1, 1], [], []>} : vector<64x128xf32>, vector<128x128xf32>, vector<64x128xf32> -> vector<64x128xf32>
    %90 = vector.broadcast %88 : vector<1x128xf32> to vector<64x128xf32>
    %91 = arith.addf %89, %90 : vector<64x128xf32>
    %92 = arith.index_cast %1 : i32 to index
    %c0_49 = arith.constant 0 : index
    %93 = vector.load %arg4[%92, %c0_49] : memref<128x128xf32, #tpu.memory_space<vmem>>, vector<64x128xf32>
    tpu.vector_store %arg4[%92, %c0_49], %91 {strides = array<i32>} : memref<128x128xf32, #tpu.memory_space<vmem>>, vector<64x128xf32>,
    %cst_50 = arith.constant dense<0.000000e+00> : vector<64x128xf32>
    %94 = tpu.matmul %85, %87, %cst_50 {dimension_numbers = #tpu.dot_dimension_numbers<[1], [0], [0], [1], [0, 0, 1, 1], [], []>} : vector<64x128xf32>, vector<128x128xf32>, vector<64x128xf32> -> vector<64x128xf32>
    %95 = vector.broadcast %88 : vector<1x128xf32> to vector<64x128xf32>
    %96 = arith.addf %94, %95 : vector<64x128xf32>
    %97 = arith.index_cast %4 : i32 to index
    %c0_51 = arith.constant 0 : index
    %98 = vector.load %arg4[%97, %c0_51] : memref<128x128xf32, #tpu.memory_space<vmem>>, vector<64x128xf32>
    tpu.vector_store %arg4[%97, %c0_51], %96 {strides = array<i32>} : memref<128x128xf32, #tpu.memory_space<vmem>>, vector<64x128xf32>,
    %c1_i32 = arith.constant 1 : i32
    return
  }
  func.func @transform_0(%arg0: i32) -> (i32, i32) {
    %c0_i32 = arith.constant 0 : i32
    %c0_i32_0 = arith.constant 0 : i32
    return %arg0, %c0_i32 : i32, i32
  }
  func.func @transform_1(%arg0: i32) -> (i32, i32, i32) {
    %c0_i32 = arith.constant 0 : i32
    %c0_i32_0 = arith.constant 0 : i32
    %c0_i32_1 = arith.constant 0 : i32
    %c0_i32_2 = arith.constant 0 : i32
    return %c0_i32, %c0_i32_0, %c0_i32_1 : i32, i32, i32
  }
  func.func @transform_2(%arg0: i32) -> (i32, i32) {
    %c0_i32 = arith.constant 0 : i32
    %c0_i32_0 = arith.constant 0 : i32
    %c0_i32_1 = arith.constant 0 : i32
    return %c0_i32, %c0_i32_0 : i32, i32
  }
  func.func @transform_3(%arg0: i32) -> (i32, i32) {
    %c0_i32 = arith.constant 0 : i32
    %c0_i32_0 = arith.constant 0 : i32
    return %arg0, %c0_i32 : i32, i32
  }
}

</mosaic_0001>

<llo_original>
// kernel: pinn_forward.1
$region0: #{pinn_forward.1}
  #allocation0 [shape = 'u32[]', space=smem, size = 0x4, offset = 0x4, fixed_abs, tag = 'smem constant byte address 0x4 - core index']
  #allocation1 [shape = 'u32[144,128]{1,0:T(1,128)}', space=vmem, size = 0x12000, scoped, tag = 'internal scratch']
  %s0 = inlined_call_operand.vmem [shape: f32[256,16], index: 0, kind: input, shape index: {}]
  %s1 = inlined_call_operand.hbm [shape: f32[8,128,128], index: 1, kind: input, shape index: {}]
  %s2 = inlined_call_operand.vmem [shape: f32[8,128], index: 2, kind: input, shape index: {}]
  %s3 = inlined_call_operand.vmem [shape: f32[256,128], index: 3, kind: output, shape index: {}]
  %s4 = sld [smem:[#allocation0]]
  $region49: #{pinn_forward.1} parent=0
    _
  %s6 = ssub.s32 1, %s4
  %s7 = scalar_select 0, %s6, %s4
  $region1: #{pinn_forward.1} parent=0
    #allocation2 [shape = 'u8[524288]{0}', space=vmem, size = 0x80000, scoped, tag = 'input window, operand 1, single buffered']
    #allocation3 [shape = 's32[2]{0}', space=sflag, size = 0x8, scoped, tag = 'scoped memory for pinn_forward.1']
    %8 = vsyncpa [#allocation3], 0
    loop: start=0, step=1, limit=4
    $region2: #{pinn_forward.1} parent=1 // loop_pre_header
      _
    $region3: #{pinn_forward.1} parent=1 // loop_header
      %s10 = sphi 0, %s14
      %p11 = scmp.ge.s32.totalorder %s10, 4
      %s20 = sphi 0, %s22
      %s23 = sphi 0, %s20
      %s24 = sphi 0, %s23
      %s40 = sphi 0, %s24
      %s44 = sphi 0, %s44
      %s46 = sphi 0, %s44
      %s47 = sphi 0, %s46
      %s61 = sphi 0, %s47
      %s65 = sphi 0, %s65
      %s67 = sphi 0, %s65
      %s68 = sphi 0, %s67
      %s82 = sphi 0, %s68
      %s88 = sphi 0, %s90
      %s91 = sphi 0, %s88
      %s92 = sphi 0, %s91
      %s108 = sphi 0, %s92
    $region4: #{pinn_forward.1} parent=1 // loop_header_branch
      %13 = sbr.rel (%p11) target = $region8
    $region5: #{pinn_forward.1} parent=1 // loop_body
      %s15 = ssub.s32 %s10, 1
      %s16 = ssub.s32 %s10, 2
      %s17 = sadd.s32 %s10, 1
      %s18 = ssub.s32 %s10, %s17
      %p19 = scmp.eq.s32.totalorder %s18, 0
      %s21 = sadd.s32 %s20, 1
      %s22 = scalar_select %p19, %s20, %s21
      %p25 = pneg %p19
      %p26 = scmp.eq.s32.totalorder %s10, 1
      %p27 = por %p25, %p26
      %p28 = scmp.ne.s32.totalorder %s20, %s23
      %p29 = scmp.eq.s32.totalorder %s10, 0
      %p30 = por %p28, %p29
      %p31 = scmp.ne.s32.totalorder %s20, %s23
      %p32 = scmp.eq.s32.totalorder %s15, 1
      %p33 = por %p31, %p32
      %p34 = scmp.ne.s32.totalorder %s23, %s24
      %p35 = scmp.eq.s32.totalorder %s15, 0
      %p36 = por %p34, %p35
      %p37 = scmp.ne.s32.totalorder %s23, %s24
      %p38 = scmp.eq.s32.totalorder %s16, 1
      %p39 = por %p37, %p38
      %p41 = scmp.ne.s32.totalorder %s24, %s40
      %p42 = scmp.eq.s32.totalorder %s16, 0
      %p43 = por %p41, %p42
      %s45 = sadd.s32 %s44, 1
      %p48 = scmp.eq.s32.totalorder %s10, 1
      %p49 = scmp.ne.s32.totalorder %s44, %s46
      %p50 = scmp.eq.s32.totalorder %s10, 0
      %p51 = por %p49, %p50
      %p52 = scmp.ne.s32.totalorder %s44, %s46
      %p53 = scmp.eq.s32.totalorder %s15, 1
      %p54 = por %p52, %p53
      %p55 = scmp.ne.s32.totalorder %s46, %s47
      %p56 = scmp.eq.s32.totalorder %s15, 0
      %p57 = por %p55, %p56
      %p58 = scmp.ne.s32.totalorder %s46, %s47
      %p59 = scmp.eq.s32.totalorder %s16, 1
      %p60 = por %p58, %p59
      %p62 = scmp.ne.s32.totalorder %s47, %s61
      %p63 = scmp.eq.s32.totalorder %s16, 0
      %p64 = por %p62, %p63
      %s66 = sadd.s32 %s65, 1
      %p69 = scmp.eq.s32.totalorder %s10, 1
      %p70 = scmp.ne.s32.totalorder %s65, %s67
      %p71 = scmp.eq.s32.totalorder %s10, 0
      %p72 = por %p70, %p71
      %p73 = scmp.ne.s32.totalorder %s65, %s67
      %p74 = scmp.eq.s32.totalorder %s15, 1
      %p75 = por %p73, %p74
      %p76 = scmp.ne.s32.totalorder %s67, %s68
      %p77 = scmp.eq.s32.totalorder %s15, 0
      %p78 = por %p76, %p77
      %p79 = scmp.ne.s32.totalorder %s67, %s68
      %p80 = scmp.eq.s32.totalorder %s16, 1
      %p81 = por %p79, %p80
      %p83 = scmp.ne.s32.totalorder %s68, %s82
      %p84 = scmp.eq.s32.totalorder %s16, 0
      %p85 = por %p83, %p84
      %s86 = ssub.s32 %s10, %s17
      %p87 = scmp.eq.s32.totalorder %s86, 0
      %s89 = sadd.s32 %s88, 1
      %s90 = scalar_select %p87, %s88, %s89
      %p93 = pneg %p87
      %p94 = scmp.eq.s32.totalorder %s10, 1
      %p95 = por %p93, %p94
      %p96 = scmp.ne.s32.totalorder %s88, %s91
      %p97 = scmp.eq.s32.totalorder %s10, 0
      %p98 = por %p96, %p97
      %p99 = scmp.ne.s32.totalorder %s88, %s91
      %p100 = scmp.eq.s32.totalorder %s15, 1
      %p101 = por %p99, %p100
      %p102 = scmp.ne.s32.totalorder %s91, %s92
      %p103 = scmp.eq.s32.totalorder %s15, 0
      %p104 = por %p102, %p103
      %p105 = scmp.ne.s32.totalorder %s91, %s92
      %p106 = scmp.eq.s32.totalorder %s16, 1
      %p107 = por %p105, %p106
      %p109 = scmp.ne.s32.totalorder %s92, %s108
      %p110 = scmp.eq.s32.totalorder %s16, 0
      %p111 = por %p109, %p110
      %p112 = scmp.le.s32.totalorder 1, %s10
      %p113 = scmp.lt.s32.totalorder %s10, 3
      %p114 = pnand %p112, %p113
      %p115 = pneg %p114
      // Predicated region
      $region9: #{pinn_forward.1} parent=5 // pred_check
        _
      $region10: #{pinn_forward.1} parent=5 // pred_check_branch
        %117 = sbr.rel (%p114) target = $region12
      $region11: #{pinn_forward.1} parent=5 // pred_region
        %s118 = ssub.s32 %s10, 1
        // Predicated region
        $region13: #{pinn_forward.1} parent=11 // pred_check
          %p119 = pneg %p57
        $region14: #{pinn_forward.1} parent=11 // pred_check_branch
          %121 = sbr.rel (%p119) target = $region16
        $region15: #{pinn_forward.1} parent=11 // pred_region
          %s123 = ssub.s32 16384, 16384
          %124 = vsyncadd [#allocation3], %s123
          %s125 = sshll.u32 [#allocation2], 4
          %s126 = int_to_ptr.vmem [resolvable:$true] %s125
          %131 = dma.hbm_to_vmem [thread:$0]  %s1, 16384, %s126, [#allocation3], 128, 128, 8
        $region16: #{pinn_forward.1} parent=11 // pred_fallthru
          _
        // Predicated region
        $region17: #{pinn_forward.1} parent=11 // pred_check
          %p132 = pneg %p78
        $region18: #{pinn_forward.1} parent=11 // pred_check_branch
          %134 = sbr.rel (%p132) target = $region20
        $region19: #{pinn_forward.1} parent=11 // pred_region
          _
        $region20: #{pinn_forward.1} parent=11 // pred_fallthru
          _
      $region12: #{pinn_forward.1} parent=5 // pred_fallthru
        _
      %p135 = scmp.lt.s32.totalorder %s10, 2
      // Predicated region
      $region21: #{pinn_forward.1} parent=5 // pred_check
        %p136 = pneg %p135
      $region22: #{pinn_forward.1} parent=5 // pred_check_branch
        %138 = sbr.rel (%p136) target = $region24
      $region23: #{pinn_forward.1} parent=5 // pred_region
        // Predicated region
        $region25: #{pinn_forward.1} parent=23 // pred_check
          %p139 = pneg %p30
        $region26: #{pinn_forward.1} parent=23 // pred_check_branch
          %141 = sbr.rel (%p139) target = $region28
        $region27: #{pinn_forward.1} parent=23 // pred_region
          %s142 = smul.u32 16, %s10
          %p143 = scmp.lt.s32.totalorder %s142, 31
          %s144 = scalar_select %p143, %s142, 31
          %s145 = smul.addr %s144, 8
          %s146 = scalar_lea.vmem %s0, %s145
          %s147 = smul.u32 16, %s10
        $region28: #{pinn_forward.1} parent=23 // pred_fallthru
          _
      $region24: #{pinn_forward.1} parent=5 // pred_fallthru
        _
      %p148 = scmp.le.s32.totalorder 1, %s10
      %p149 = scmp.lt.s32.totalorder %s10, 3
      %p150 = pnand %p148, %p149
      %p151 = pneg %p150
      // Predicated region
      $region29: #{pinn_forward.1} parent=5 // pred_check
        _
      $region30: #{pinn_forward.1} parent=5 // pred_check_branch
        %153 = sbr.rel (%p150) target = $region32
      $region31: #{pinn_forward.1} parent=5 // pred_region
        %s154 = ssub.s32 %s10, 1
        // Predicated region
        $region33: #{pinn_forward.1} parent=31 // pred_check
          %p155 = pneg %p57
        $region34: #{pinn_forward.1} parent=31 // pred_check_branch
          %157 = sbr.rel (%p155) target = $region36
        $region35: #{pinn_forward.1} parent=31 // pred_region
          %158 = dma.done [#allocation3], 16384
        $region36: #{pinn_forward.1} parent=31 // pred_fallthru
          _
        %s159 = smul.u32 16, %s15
        %p160 = scmp.lt.s32.totalorder %s159, 31
        %s161 = scalar_select %p160, %s159, 31
        %s162 = smul.addr %s161, 8
        %s163 = scalar_lea.vmem %s0, %s162
        %p164 = pneg %p36
        %p165 = pneg %p33
        %p166 = pneg %p57
        %p167 = pneg %p54
        %p168 = pneg %p78
        %p169 = pneg %p75
        %p170 = pneg %p104
        %p171 = pneg %p101
        %s172 = smul.u32 16, %s15
        %p173 = scmp.lt.s32.totalorder %s172, 31
        %s174 = scalar_select %p173, %s172, 31
        %s175 = smul.addr %s174, 8
        %s176 = scalar_lea.vmem %s3, %s175
        %s177 = smul.u32 16, %s15
        %p178 = scmp.lt.s32.totalorder %s177, 31
        %s179 = scalar_select %p178, %s177, 31
        %s180 = smul.addr %s179, 8
        %s181 = scalar_lea.vmem %s0, %s180
        %s182 = smul.u32 16, %s15
        %s183 = smul.u32 16, %s15
        %p184 = scmp.lt.s32.totalorder %s183, 31
        %s185 = scalar_select %p184, %s183, 31
        %s186 = smul.addr %s185, 8
        %s187 = scalar_lea.vmem %s3, %s186
        %s188 = smul.u32 16, %s15
        %v189 = vld [vmem:[#allocation2] sm:$0xff]
        %v190 = vld [vmem:[#allocation2 + $0x8] sm:$0xff]
        %v191 = vld [vmem:[%s2] sm:$0x1]
        %v192 = vld [vmem:[%s181] sm:$0xff]
        %v193 = vld [vmem:[%s181 + $0x8] sm:$0xff]
        %v194 = vld [vmem:[%s181 + $0x10] sm:$0xff]
        %v195 = vld [vmem:[%s181 + $0x18] sm:$0xff]
        %v196 = vld [vmem:[%s181 + $0x20] sm:$0xff]
        %v197 = vld [vmem:[%s181 + $0x28] sm:$0xff]
        %v198 = vld [vmem:[%s181 + $0x30] sm:$0xff]
        %v199 = vld [vmem:[%s181 + $0x38] sm:$0xff]
        %s200 = scalar_lea.vmem %s181, 64
        %v201 = vld [vmem:[%s200] sm:$0xff]
        %v202 = vld [vmem:[%s200 + $0x8] sm:$0xff]
        %v203 = vld [vmem:[%s200 + $0x10] sm:$0xff]
        %v204 = vld [vmem:[%s200 + $0x18] sm:$0xff]
        %v205 = vld [vmem:[%s200 + $0x20] sm:$0xff]
        %v206 = vld [vmem:[%s200 + $0x28] sm:$0xff]
        %v207 = vld [vmem:[%s200 + $0x30] sm:$0xff]
        %v208 = vld [vmem:[%s200 + $0x38] sm:$0xff]
        %v209 = vlaneseq
        %v210 = vshrl.u32 %v209, 7
        %v211 = vsub.s32 0, %v210
        %v212 = vrot.slane %v191, %v211
        %vm213 = vcmask 130048
        %v215 = vsel %vm213, %v192, 0
        %v218 = vsel %vm213, %v193, 0
        %v221 = vsel %vm213, %v194, 0
        %v224 = vsel %vm213, %v195, 0
        %v227 = vsel %vm213, %v196, 0
        %v230 = vsel %vm213, %v197, 0
        %v233 = vsel %vm213, %v198, 0
        %v236 = vsel %vm213, %v199, 0
        %238 = vmatprep.subr.mxu0 0.0
        %239 = vmatpush1.msra.mxu0 %v189
        %240 = vmatprep.subr.mxu0 0.0
        %241 = vmatpush1.msra.mxu0 %v190
        %242 = vmatprep.subr.mxu0 0.0
        %243 = vmatpush1.msra.mxu0 0.0
        %244 = vmatprep.subr.mxu0 0.0
        %245 = vmatpush1.msra.mxu0 0.0
        %246 = vmatprep.subr.mxu0 0.0
        %247 = vmatpush1.msra.mxu0 0.0
        %248 = vmatprep.subr.mxu0 0.0
        %249 = vmatpush1.msra.mxu0 0.0
        %250 = vmatprep.subr.mxu0 0.0
        %251 = vmatpush1.msra.mxu0 0.0
        %252 = vmatprep.subr.mxu0 0.0
        %253 = vmatpush1.msra.mxu0 0.0
        %254 = vmatprep.subr.mxu0 0.0
        %255 = vmatpush1.msra.mxu0 0.0
        %256 = vmatprep.subr.mxu0 0.0
        %257 = vmatpush1.msra.mxu0 0.0
        %258 = vmatprep.subr.mxu0 0.0
        %259 = vmatpush1.msra.mxu0 0.0
        %260 = vmatprep.subr.mxu0 0.0
        %261 = vmatpush1.msra.mxu0 0.0
        %262 = vmatprep.subr.mxu0 0.0
        %263 = vmatpush1.msra.mxu0 0.0
        %264 = vmatprep.subr.mxu0 0.0
        %265 = vmatpush1.msra.mxu0 0.0
        %266 = vmatprep.subr.mxu0 0.0
        %267 = vmatpush1.msra.mxu0 0.0
        %268 = vmatprep.subr.mxu0 0.0
        %269 = vmatpush1.msra.mxu0 0.0
        %270 = vmatprep.subr.mxu0 0.0
        %271 = vmatpush1.msra.mxu0 0.0
        %272 = vmatprep.subr.mxu0 0.0
        %273 = vmatpush1.msra.mxu0 0.0
        %274 = vmatprep.subr.mxu0 0.0
        %275 = vmatpush1.msra.mxu0 0.0
        %276 = vmatprep.subr.mxu0 0.0
        %277 = vmatpush1.msra.mxu0 0.0
        %278 = vmatprep.subr.mxu0 0.0
        %279 = vmatpush1.msra.mxu0 0.0
        %280 = vmatprep.subr.mxu0 0.0
        %281 = vmatpush1.msra.mxu0 0.0
        %282 = vmatprep.subr.mxu0 0.0
        %283 = vmatpush1.msra.mxu0 0.0
        %284 = vmatprep.subr.mxu0 0.0
        %285 = vmatpush1.msra.mxu0 0.0
        %286 = vmatprep.subr.mxu0 0.0
        %287 = vmatpush1.msra.mxu0 0.0
        %288 = vmatprep.subr.mxu0 0.0
        %289 = vmatpush1.msra.mxu0 0.0
        %290 = vmatprep.subr.mxu0 0.0
        %291 = vmatpush1.msra.mxu0 0.0
        %292 = vmatprep.subr.mxu0 0.0
        %293 = vmatpush1.msra.mxu0 0.0
        %294 = vmatprep.subr.mxu0 0.0
        %295 = vmatpush1.msra.mxu0 0.0
        %296 = vmatprep.subr.mxu0 0.0
        %297 = vmatpush1.msra.mxu0 0.0
        %298 = vmatprep.subr.mxu0 0.0
        %299 = vmatpush1.msra.mxu0 0.0
        %300 = vmatprep.subr.mxu0 0.0
        %301 = vmatpush1.msra.mxu0 0.0
        %302 = vmatprep.mubr.f32.mxu0 0.0
        %303 = vmatmul.mubr.f32.gmra.mrb[0].mxu0 %v215
        %v304 = vpop.f32.mrb[0].mxu0
        %v305 = vadd.f32 %v212, %v304
        %v306 = vpop.f32.mrb[0].mxu0
        %307 = vmatprep.mubr.f32.mxu0 0.0
        %308 = vmatmul.mubr.f32.gmra.mrb[0].mxu0 %v218
        %v309 = vpop.f32.mrb[0].mxu0
        %v310 = vadd.f32 %v212, %v309
        %v311 = vpop.f32.mrb[0].mxu0
        %312 = vmatprep.mubr.f32.mxu0 0.0
        %313 = vmatmul.mubr.f32.gmra.mrb[0].mxu0 %v221
        %v314 = vpop.f32.mrb[0].mxu0
        %v315 = vadd.f32 %v212, %v314
        %v316 = vpop.f32.mrb[0].mxu0
        %317 = vmatprep.mubr.f32.mxu0 0.0
        %318 = vmatmul.mubr.f32.gmra.mrb[0].mxu0 %v224
        %v319 = vpop.f32.mrb[0].mxu0
        %v320 = vadd.f32 %v212, %v319
        %v321 = vpop.f32.mrb[0].mxu0
        %322 = vmatprep.mubr.f32.mxu0 0.0
        %323 = vmatmul.mubr.f32.gmra.mrb[0].mxu0 %v227
        %v324 = vpop.f32.mrb[0].mxu0
        %v325 = vadd.f32 %v212, %v324
        %v326 = vpop.f32.mrb[0].mxu0
        %327 = vmatprep.mubr.f32.mxu0 0.0
        %328 = vmatmul.mubr.f32.gmra.mrb[0].mxu0 %v230
        %v329 = vpop.f32.mrb[0].mxu0
        %v330 = vadd.f32 %v212, %v329
        %v331 = vpop.f32.mrb[0].mxu0
        %332 = vmatprep.mubr.f32.mxu0 0.0
        %333 = vmatmul.mubr.f32.gmra.mrb[0].mxu0 %v233
        %v334 = vpop.f32.mrb[0].mxu0
        %v335 = vadd.f32 %v212, %v334
        %v336 = vpop.f32.mrb[0].mxu0
        %337 = vmatprep.mubr.f32.mxu0 0.0
        %338 = vmatmul.mubr.f32.gmra.mrb[0].mxu0 %v236
        %v339 = vpop.f32.mrb[0].mxu0
        %v340 = vadd.f32 %v212, %v339
        %v341 = vpop.f32.mrb[0].mxu0
        %342 = vdwg.mxu0
        %v344 = vsel %vm213, %v201, 0
        %v347 = vsel %vm213, %v202, 0
        %v350 = vsel %vm213, %v203, 0
        %v353 = vsel %vm213, %v204, 0
        %v356 = vsel %vm213, %v205, 0
        %v359 = vsel %vm213, %v206, 0
        %v362 = vsel %vm213, %v207, 0
        %v365 = vsel %vm213, %v208, 0
        %367 = vmatprep.subr.mxu0 0.0
        %368 = vmatpush1.msra.mxu0 %v189
        %369 = vmatprep.subr.mxu0 0.0
        %370 = vmatpush1.msra.mxu0 %v190
        %371 = vmatprep.subr.mxu0 0.0
        %372 = vmatpush1.msra.mxu0 0.0
        %373 = vmatprep.subr.mxu0 0.0
        %374 = vmatpush1.msra.mxu0 0.0
        %375 = vmatprep.subr.mxu0 0.0
        %376 = vmatpush1.msra.mxu0 0.0
        %377 = vmatprep.subr.mxu0 0.0
        %378 = vmatpush1.msra.mxu0 0.0
        %379 = vmatprep.subr.mxu0 0.0
        %380 = vmatpush1.msra.mxu0 0.0
        %381 = vmatprep.subr.mxu0 0.0
        %382 = vmatpush1.msra.mxu0 0.0
        %383 = vmatprep.subr.mxu0 0.0
        %384 = vmatpush1.msra.mxu0 0.0
        %385 = vmatprep.subr.mxu0 0.0
        %386 = vmatpush1.msra.mxu0 0.0
        %387 = vmatprep.subr.mxu0 0.0
        %388 = vmatpush1.msra.mxu0 0.0
        %389 = vmatprep.subr.mxu0 0.0
        %390 = vmatpush1.msra.mxu0 0.0
        %391 = vmatprep.subr.mxu0 0.0
        %392 = vmatpush1.msra.mxu0 0.0
        %393 = vmatprep.subr.mxu0 0.0
        %394 = vmatpush1.msra.mxu0 0.0
        %395 = vmatprep.subr.mxu0 0.0
        %396 = vmatpush1.msra.mxu0 0.0
        %397 = vmatprep.subr.mxu0 0.0
        %398 = vmatpush1.msra.mxu0 0.0
        %399 = vmatprep.subr.mxu0 0.0
        %400 = vmatpush1.msra.mxu0 0.0
        %401 = vmatprep.subr.mxu0 0.0
        %402 = vmatpush1.msra.mxu0 0.0
        %403 = vmatprep.subr.mxu0 0.0
        %404 = vmatpush1.msra.mxu0 0.0
        %405 = vmatprep.subr.mxu0 0.0
        %406 = vmatpush1.msra.mxu0 0.0
        %407 = vmatprep.subr.mxu0 0.0
        %408 = vmatpush1.msra.mxu0 0.0
        %409 = vmatprep.subr.mxu0 0.0
        %410 = vmatpush1.msra.mxu0 0.0
        %411 = vmatprep.subr.mxu0 0.0
        %412 = vmatpush1.msra.mxu0 0.0
        %413 = vmatprep.subr.mxu0 0.0
        %414 = vmatpush1.msra.mxu0 0.0
        %415 = vmatprep.subr.mxu0 0.0
        %416 = vmatpush1.msra.mxu0 0.0
        %417 = vmatprep.subr.mxu0 0.0
        %418 = vmatpush1.msra.mxu0 0.0
        %419 = vmatprep.subr.mxu0 0.0
        %420 = vmatpush1.msra.mxu0 0.0
        %421 = vmatprep.subr.mxu0 0.0
        %422 = vmatpush1.msra.mxu0 0.0
        %423 = vmatprep.subr.mxu0 0.0
        %424 = vmatpush1.msra.mxu0 0.0
        %425 = vmatprep.subr.mxu0 0.0
        %426 = vmatpush1.msra.mxu0 0.0
        %427 = vmatprep.subr.mxu0 0.0
        %428 = vmatpush1.msra.mxu0 0.0
        %429 = vmatprep.subr.mxu0 0.0
        %430 = vmatpush1.msra.mxu0 0.0
        %431 = vmatprep.mubr.f32.mxu0 0.0
        %432 = vmatmul.mubr.f32.gmra.mrb[0].mxu0 %v344
        %v433 = vpop.f32.mrb[0].mxu0
        %v434 = vadd.f32 %v212, %v433
        %v435 = vpop.f32.mrb[0].mxu0
        %436 = vmatprep.mubr.f32.mxu0 0.0
        %437 = vmatmul.mubr.f32.gmra.mrb[0].mxu0 %v347
        %v438 = vpop.f32.mrb[0].mxu0
        %v439 = vadd.f32 %v212, %v438
        %v440 = vpop.f32.mrb[0].mxu0
        %441 = vmatprep.mubr.f32.mxu0 0.0
        %442 = vmatmul.mubr.f32.gmra.mrb[0].mxu0 %v350
        %v443 = vpop.f32.mrb[0].mxu0
        %v444 = vadd.f32 %v212, %v443
        %v445 = vpop.f32.mrb[0].mxu0
        %446 = vmatprep.mubr.f32.mxu0 0.0
        %447 = vmatmul.mubr.f32.gmra.mrb[0].mxu0 %v353
        %v448 = vpop.f32.mrb[0].mxu0
        %v449 = vadd.f32 %v212, %v448
        %v450 = vpop.f32.mrb[0].mxu0
        %451 = vmatprep.mubr.f32.mxu0 0.0
        %452 = vmatmul.mubr.f32.gmra.mrb[0].mxu0 %v356
        %v453 = vpop.f32.mrb[0].mxu0
        %v454 = vadd.f32 %v212, %v453
        %v455 = vpop.f32.mrb[0].mxu0
        %456 = vmatprep.mubr.f32.mxu0 0.0
        %457 = vmatmul.mubr.f32.gmra.mrb[0].mxu0 %v359
        %v458 = vpop.f32.mrb[0].mxu0
        %v459 = vadd.f32 %v212, %v458
        %v460 = vpop.f32.mrb[0].mxu0
        %461 = vmatprep.mubr.f32.mxu0 0.0
        %462 = vmatmul.mubr.f32.gmra.mrb[0].mxu0 %v362
        %v463 = vpop.f32.mrb[0].mxu0
        %v464 = vadd.f32 %v212, %v463
        %v465 = vpop.f32.mrb[0].mxu0
        %466 = vmatprep.mubr.f32.mxu0 0.0
        %467 = vmatmul.mubr.f32.gmra.mrb[0].mxu0 %v365
        %v468 = vpop.f32.mrb[0].mxu0
        %v469 = vadd.f32 %v212, %v468
        %v470 = vpop.f32.mrb[0].mxu0
        %471 = vdwg.mxu0
        %v472 = vtanh.pop %v305
        %v473 = vtanh.pop %v310
        %v474 = vtanh.pop %v315
        %v475 = vtanh.pop %v320
        %v476 = vtanh.pop %v325
        %v477 = vtanh.pop %v330
        %v478 = vtanh.pop %v335
        %v479 = vtanh.pop %v340
        %v480 = vtanh.pop %v434
        %v481 = vtanh.pop %v439
        %v482 = vtanh.pop %v444
        %v483 = vtanh.pop %v449
        %v484 = vtanh.pop %v454
        %v485 = vtanh.pop %v459
        %v486 = vtanh.pop %v464
        %v487 = vtanh.pop %v469
        %s488 = scalar_lea.vmem [#allocation2], 128
        %v489 = vld [vmem:[%s488] sm:$0xff]
        %v490 = vld [vmem:[%s488 + $0x8] sm:$0xff]
        %v491 = vld [vmem:[%s488 + $0x10] sm:$0xff]
        %v492 = vld [vmem:[%s488 + $0x18] sm:$0xff]
        %v493 = vld [vmem:[%s488 + $0x20] sm:$0xff]
        %v494 = vld [vmem:[%s488 + $0x28] sm:$0xff]
        %v495 = vld [vmem:[%s488 + $0x30] sm:$0xff]
        %v496 = vld [vmem:[%s488 + $0x38] sm:$0xff]
        %v497 = vld [vmem:[%s488 + $0x40] sm:$0xff]
        %v498 = vld [vmem:[%s488 + $0x48] sm:$0xff]
        %v499 = vld [vmem:[%s488 + $0x50] sm:$0xff]
        %v500 = vld [vmem:[%s488 + $0x58] sm:$0xff]
        %v501 = vld [vmem:[%s488 + $0x60] sm:$0xff]
        %v502 = vld [vmem:[%s488 + $0x68] sm:$0xff]
        %v503 = vld [vmem:[%s488 + $0x70] sm:$0xff]
        %v504 = vld [vmem:[%s488 + $0x78] sm:$0xff]
        %v505 = vld [vmem:[%s2 + $0x1] sm:$0x1]
        %v506 = vlaneseq
        %v507 = vshrl.u32 %v506, 7
        %v508 = vsub.s32 0, %v507
        %v509 = vrot.slane %v505, %v508
        %510 = vmatprep.subr.mxu0 0.0
        %511 = vmatpush1.msra.mxu0 %v489
        %512 = vmatprep.subr.mxu0 0.0
        %513 = vmatpush1.msra.mxu0 %v490
        %514 = vmatprep.subr.mxu0 0.0
        %515 = vmatpush1.msra.mxu0 %v491
        %516 = vmatprep.subr.mxu0 0.0
        %517 = vmatpush1.msra.mxu0 %v492
        %518 = vmatprep.subr.mxu0 0.0
        %519 = vmatpush1.msra.mxu0 %v493
        %520 = vmatprep.subr.mxu0 0.0
        %521 = vmatpush1.msra.mxu0 %v494
        %522 = vmatprep.subr.mxu0 0.0
        %523 = vmatpush1.msra.mxu0 %v495
        %524 = vmatprep.subr.mxu0 0.0
        %525 = vmatpush1.msra.mxu0 %v496
        %526 = vmatprep.subr.mxu0 0.0
        %527 = vmatpush1.msra.mxu0 %v497
        %528 = vmatprep.subr.mxu0 0.0
        %529 = vmatpush1.msra.mxu0 %v498
        %530 = vmatprep.subr.mxu0 0.0
        %531 = vmatpush1.msra.mxu0 %v499
        %532 = vmatprep.subr.mxu0 0.0
        %533 = vmatpush1.msra.mxu0 %v500
        %534 = vmatprep.subr.mxu0 0.0
        %535 = vmatpush1.msra.mxu0 %v501
        %536 = vmatprep.subr.mxu0 0.0
        %537 = vmatpush1.msra.mxu0 %v502
        %538 = vmatprep.subr.mxu0 0.0
        %539 = vmatpush1.msra.mxu0 %v503
        %540 = vmatprep.subr.mxu0 0.0
        %541 = vmatpush1.msra.mxu0 %v504
        %542 = vmatprep.subr.mxu0 0.0
        %543 = vmatpush1.msra.mxu0 0.0
        %544 = vmatprep.subr.mxu0 0.0
        %545 = vmatpush1.msra.mxu0 0.0
        %546 = vmatprep.subr.mxu0 0.0
        %547 = vmatpush1.msra.mxu0 0.0
        %548 = vmatprep.subr.mxu0 0.0
        %549 = vmatpush1.msra.mxu0 0.0
        %550 = vmatprep.subr.mxu0 0.0
        %551 = vmatpush1.msra.mxu0 0.0
        %552 = vmatprep.subr.mxu0 0.0
        %553 = vmatpush1.msra.mxu0 0.0
        %554 = vmatprep.subr.mxu0 0.0
        %555 = vmatpush1.msra.mxu0 0.0
        %556 = vmatprep.subr.mxu0 0.0
        %557 = vmatpush1.msra.mxu0 0.0
        %558 = vmatprep.subr.mxu0 0.0
        %559 = vmatpush1.msra.mxu0 0.0
        %560 = vmatprep.subr.mxu0 0.0
        %561 = vmatpush1.msra.mxu0 0.0
        %562 = vmatprep.subr.mxu0 0.0
        %563 = vmatpush1.msra.mxu0 0.0
        %564 = vmatprep.subr.mxu0 0.0
        %565 = vmatpush1.msra.mxu0 0.0
        %566 = vmatprep.subr.mxu0 0.0
        %567 = vmatpush1.msra.mxu0 0.0
        %568 = vmatprep.subr.mxu0 0.0
        %569 = vmatpush1.msra.mxu0 0.0
        %570 = vmatprep.subr.mxu0 0.0
        %571 = vmatpush1.msra.mxu0 0.0
        %572 = vmatprep.subr.mxu0 0.0
        %573 = vmatpush1.msra.mxu0 0.0
        %574 = vmatprep.mubr.f32.mxu0 0.0
        %575 = vmatmul.mubr.f32.gmra.mrb[0].mxu0 %v472
        %v576 = vpop.f32.mrb[0].mxu0
        %v577 = vadd.f32 %v509, %v576
        %v578 = vpop.f32.mrb[0].mxu0
        %579 = vmatprep.mubr.f32.mxu0 0.0
        %580 = vmatmul.mubr.f32.gmra.mrb[0].mxu0 %v473
        %v581 = vpop.f32.mrb[0].mxu0
        %v582 = vadd.f32 %v509, %v581
        %v583 = vpop.f32.mrb[0].mxu0
        %584 = vmatprep.mubr.f32.mxu0 0.0
        %585 = vmatmul.mubr.f32.gmra.mrb[0].mxu0 %v474
        %v586 = vpop.f32.mrb[0].mxu0
        %v587 = vadd.f32 %v509, %v586
        %v588 = vpop.f32.mrb[0].mxu0
        %589 = vmatprep.mubr.f32.mxu0 0.0
        %590 = vmatmul.mubr.f32.gmra.mrb[0].mxu0 %v475
        %v591 = vpop.f32.mrb[0].mxu0
        %v592 = vadd.f32 %v509, %v591
        %v593 = vpop.f32.mrb[0].mxu0
        %594 = vmatprep.mubr.f32.mxu0 0.0
        %595 = vmatmul.mubr.f32.gmra.mrb[0].mxu0 %v476
        %v596 = vpop.f32.mrb[0].mxu0
        %v597 = vadd.f32 %v509, %v596
        %v598 = vpop.f32.mrb[0].mxu0
        %599 = vmatprep.mubr.f32.mxu0 0.0
        %600 = vmatmul.mubr.f32.gmra.mrb[0].mxu0 %v477
        %v601 = vpop.f32.mrb[0].mxu0
        %v602 = vadd.f32 %v509, %v601
        %v603 = vpop.f32.mrb[0].mxu0
        %604 = vmatprep.mubr.f32.mxu0 0.0
        %605 = vmatmul.mubr.f32.gmra.mrb[0].mxu0 %v478
        %v606 = vpop.f32.mrb[0].mxu0
        %v607 = vadd.f32 %v509, %v606
        %v608 = vpop.f32.mrb[0].mxu0
        %609 = vmatprep.mubr.f32.mxu0 0.0
        %610 = vmatmul.mubr.f32.gmra.mrb[0].mxu0 %v479
        %v611 = vpop.f32.mrb[0].mxu0
        %v612 = vadd.f32 %v509, %v611
        %v613 = vpop.f32.mrb[0].mxu0
        %614 = vdwg.mxu0
        %615 = vmatprep.subr.mxu0 0.0
        %616 = vmatpush1.msra.mxu0 %v489
        %617 = vmatprep.subr.mxu0 0.0
        %618 = vmatpush1.msra.mxu0 %v490
        %619 = vmatprep.subr.mxu0 0.0
        %620 = vmatpush1.msra.mxu0 %v491
        %621 = vmatprep.subr.mxu0 0.0
        %622 = vmatpush1.msra.mxu0 %v492
        %623 = vmatprep.subr.mxu0 0.0
        %624 = vmatpush1.msra.mxu0 %v493
        %625 = vmatprep.subr.mxu0 0.0
        %626 = vmatpush1.msra.mxu0 %v494
        %627 = vmatprep.subr.mxu0 0.0
        %628 = vmatpush1.msra.mxu0 %v495
        %629 = vmatprep.subr.mxu0 0.0
        %630 = vmatpush1.msra.mxu0 %v496
        %631 = vmatprep.subr.mxu0 0.0
        %632 = vmatpush1.msra.mxu0 %v497
        %633 = vmatprep.subr.mxu0 0.0
        %634 = vmatpush1.msra.mxu0 %v498
        %635 = vmatprep.subr.mxu0 0.0
        %636 = vmatpush1.msra.mxu0 %v499
        %637 = vmatprep.subr.mxu0 0.0
        %638 = vmatpush1.msra.mxu0 %v500
        %639 = vmatprep.subr.mxu0 0.0
        %640 = vmatpush1.msra.mxu0 %v501
        %641 = vmatprep.subr.mxu0 0.0
        %642 = vmatpush1.msra.mxu0 %v502
        %643 = vmatprep.subr.mxu0 0.0
        %644 = vmatpush1.msra.mxu0 %v503
        %645 = vmatprep.subr.mxu0 0.0
        %646 = vmatpush1.msra.mxu0 %v504
        %647 = vmatprep.subr.mxu0 0.0
        %648 = vmatpush1.msra.mxu0 0.0
        %649 = vmatprep.subr.mxu0 0.0
        %650 = vmatpush1.msra.mxu0 0.0
        %651 = vmatprep.subr.mxu0 0.0
        %652 = vmatpush1.msra.mxu0 0.0
        %653 = vmatprep.subr.mxu0 0.0
        %654 = vmatpush1.msra.mxu0 0.0
        %655 = vmatprep.subr.mxu0 0.0
        %656 = vmatpush1.msra.mxu0 0.0
        %657 = vmatprep.subr.mxu0 0.0
        %658 = vmatpush1.msra.mxu0 0.0
        %659 = vmatprep.subr.mxu0 0.0
        %660 = vmatpush1.msra.mxu0 0.0
        %661 = vmatprep.subr.mxu0 0.0
        %662 = vmatpush1.msra.mxu0 0.0
        %663 = vmatprep.subr.mxu0 0.0
        %664 = vmatpush1.msra.mxu0 0.0
        %665 = vmatprep.subr.mxu0 0.0
        %666 = vmatpush1.msra.mxu0 0.0
        %667 = vmatprep.subr.mxu0 0.0
        %668 = vmatpush1.msra.mxu0 0.0
        %669 = vmatprep.subr.mxu0 0.0
        %670 = vmatpush1.msra.mxu0 0.0
        %671 = vmatprep.subr.mxu0 0.0
        %672 = vmatpush1.msra.mxu0 0.0
        %673 = vmatprep.subr.mxu0 0.0
        %674 = vmatpush1.msra.mxu0 0.0
        %675 = vmatprep.subr.mxu0 0.0
        %676 = vmatpush1.msra.mxu0 0.0
        %677 = vmatprep.subr.mxu0 0.0
        %678 = vmatpush1.msra.mxu0 0.0
        %679 = vmatprep.mubr.f32.mxu0 0.0
        %680 = vmatmul.mubr.f32.gmra.mrb[0].mxu0 %v480
        %v681 = vpop.f32.mrb[0].mxu0
        %v682 = vadd.f32 %v509, %v681
        %v683 = vpop.f32.mrb[0].mxu0
        %684 = vmatprep.mubr.f32.mxu0 0.0
        %685 = vmatmul.mubr.f32.gmra.mrb[0].mxu0 %v481
        %v686 = vpop.f32.mrb[0].mxu0
        %v687 = vadd.f32 %v509, %v686
        %v688 = vpop.f32.mrb[0].mxu0
        %689 = vmatprep.mubr.f32.mxu0 0.0
        %690 = vmatmul.mubr.f32.gmra.mrb[0].mxu0 %v482
        %v691 = vpop.f32.mrb[0].mxu0
        %v692 = vadd.f32 %v509, %v691
        %v693 = vpop.f32.mrb[0].mxu0
        %694 = vmatprep.mubr.f32.mxu0 0.0
        %695 = vmatmul.mubr.f32.gmra.mrb[0].mxu0 %v483
        %v696 = vpop.f32.mrb[0].mxu0
        %v697 = vadd.f32 %v509, %v696
        %v698 = vpop.f32.mrb[0].mxu0
        %699 = vmatprep.mubr.f32.mxu0 0.0
        %700 = vmatmul.mubr.f32.gmra.mrb[0].mxu0 %v484
        %v701 = vpop.f32.mrb[0].mxu0
        %v702 = vadd.f32 %v509, %v701
        %v703 = vpop.f32.mrb[0].mxu0
        %704 = vmatprep.mubr.f32.mxu0 0.0
        %705 = vmatmul.mubr.f32.gmra.mrb[0].mxu0 %v485
        %v706 = vpop.f32.mrb[0].mxu0
        %v707 = vadd.f32 %v509, %v706
        %v708 = vpop.f32.mrb[0].mxu0
        %709 = vmatprep.mubr.f32.mxu0 0.0
        %710 = vmatmul.mubr.f32.gmra.mrb[0].mxu0 %v486
        %v711 = vpop.f32.mrb[0].mxu0
        %v712 = vadd.f32 %v509, %v711
        %v713 = vpop.f32.mrb[0].mxu0
        %714 = vmatprep.mubr.f32.mxu0 0.0
        %715 = vmatmul.mubr.f32.gmra.mrb[0].mxu0 %v487
        %v716 = vpop.f32.mrb[0].mxu0
        %v717 = vadd.f32 %v509, %v716
        %v718 = vpop.f32.mrb[0].mxu0
        %719 = vdwg.mxu0
        %v720 = vtanh.pop %v577
        %v721 = vtanh.pop %v582
        %v722 = vtanh.pop %v587
        %v723 = vtanh.pop %v592
        %v724 = vtanh.pop %v597
        %v725 = vtanh.pop %v602
        %v726 = vtanh.pop %v607
        %v727 = vtanh.pop %v612
        %v728 = vtanh.pop %v682
        %v729 = vtanh.pop %v687
        %v730 = vtanh.pop %v692
        %v731 = vtanh.pop %v697
        %v732 = vtanh.pop %v702
        %v733 = vtanh.pop %v707
        %v734 = vtanh.pop %v712
        %v735 = vtanh.pop %v717
        %s736 = scalar_lea.vmem [#allocation2], 256
        %v737 = vld [vmem:[%s736] sm:$0xff]
        %v738 = vld [vmem:[%s736 + $0x8] sm:$0xff]
        %v739 = vld [vmem:[%s736 + $0x10] sm:$0xff]
        %v740 = vld [vmem:[%s736 + $0x18] sm:$0xff]
        %v741 = vld [vmem:[%s736 + $0x20] sm:$0xff]
        %v742 = vld [vmem:[%s736 + $0x28] sm:$0xff]
        %v743 = vld [vmem:[%s736 + $0x30] sm:$0xff]
        %v744 = vld [vmem:[%s736 + $0x38] sm:$0xff]
        %v745 = vld [vmem:[%s736 + $0x40] sm:$0xff]
        %v746 = vld [vmem:[%s736 + $0x48] sm:$0xff]
        %v747 = vld [vmem:[%s736 + $0x50] sm:$0xff]
        %v748 = vld [vmem:[%s736 + $0x58] sm:$0xff]
        %v749 = vld [vmem:[%s736 + $0x60] sm:$0xff]
        %v750 = vld [vmem:[%s736 + $0x68] sm:$0xff]
        %v751 = vld [vmem:[%s736 + $0x70] sm:$0xff]
        %v752 = vld [vmem:[%s736 + $0x78] sm:$0xff]
        %v753 = vld [vmem:[%s2 + $0x2] sm:$0x1]
        %v754 = vlaneseq
        %v755 = vshrl.u32 %v754, 7
        %v756 = vsub.s32 0, %v755
        %v757 = vrot.slane %v753, %v756
        %758 = vmatprep.subr.mxu0 0.0
        %759 = vmatpush1.msra.mxu0 %v737
        %760 = vmatprep.subr.mxu0 0.0
        %761 = vmatpush1.msra.mxu0 %v738
        %762 = vmatprep.subr.mxu0 0.0
        %763 = vmatpush1.msra.mxu0 %v739
        %764 = vmatprep.subr.mxu0 0.0
        %765 = vmatpush1.msra.mxu0 %v740
        %766 = vmatprep.subr.mxu0 0.0
        %767 = vmatpush1.msra.mxu0 %v741
        %768 = vmatprep.subr.mxu0 0.0
        %769 = vmatpush1.msra.mxu0 %v742
        %770 = vmatprep.subr.mxu0 0.0
        %771 = vmatpush1.msra.mxu0 %v743
        %772 = vmatprep.subr.mxu0 0.0
        %773 = vmatpush1.msra.mxu0 %v744
        %774 = vmatprep.subr.mxu0 0.0
        %775 = vmatpush1.msra.mxu0 %v745
        %776 = vmatprep.subr.mxu0 0.0
        %777 = vmatpush1.msra.mxu0 %v746
        %778 = vmatprep.subr.mxu0 0.0
        %779 = vmatpush1.msra.mxu0 %v747
        %780 = vmatprep.subr.mxu0 0.0
        %781 = vmatpush1.msra.mxu0 %v748
        %782 = vmatprep.subr.mxu0 0.0
        %783 = vmatpush1.msra.mxu0 %v749
        %784 = vmatprep.subr.mxu0 0.0
        %785 = vmatpush1.msra.mxu0 %v750
        %786 = vmatprep.subr.mxu0 0.0
        %787 = vmatpush1.msra.mxu0 %v751
        %788 = vmatprep.subr.mxu0 0.0
        %789 = vmatpush1.msra.mxu0 %v752
        %790 = vmatprep.subr.mxu0 0.0
        %791 = vmatpush1.msra.mxu0 0.0
        %792 = vmatprep.subr.mxu0 0.0
        %793 = vmatpush1.msra.mxu0 0.0
        %794 = vmatprep.subr.mxu0 0.0
        %795 = vmatpush1.msra.mxu0 0.0
        %796 = vmatprep.subr.mxu0 0.0
        %797 = vmatpush1.msra.mxu0 0.0
        %798 = vmatprep.subr.mxu0 0.0
        %799 = vmatpush1.msra.mxu0 0.0
        %800 = vmatprep.subr.mxu0 0.0
        %801 = vmatpush1.msra.mxu0 0.0
        %802 = vmatprep.subr.mxu0 0.0
        %803 = vmatpush1.msra.mxu0 0.0
        %804 = vmatprep.subr.mxu0 0.0
        %805 = vmatpush1.msra.mxu0 0.0
        %806 = vmatprep.subr.mxu0 0.0
        %807 = vmatpush1.msra.mxu0 0.0
        %808 = vmatprep.subr.mxu0 0.0
        %809 = vmatpush1.msra.mxu0 0.0
        %810 = vmatprep.subr.mxu0 0.0
        %811 = vmatpush1.msra.mxu0 0.0
        %812 = vmatprep.subr.mxu0 0.0
        %813 = vmatpush1.msra.mxu0 0.0
        %814 = vmatprep.subr.mxu0 0.0
        %815 = vmatpush1.msra.mxu0 0.0
        %816 = vmatprep.subr.mxu0 0.0
        %817 = vmatpush1.msra.mxu0 0.0
        %818 = vmatprep.subr.mxu0 0.0
        %819 = vmatpush1.msra.mxu0 0.0
        %820 = vmatprep.subr.mxu0 0.0
        %821 = vmatpush1.msra.mxu0 0.0
        %822 = vmatprep.mubr.f32.mxu0 0.0
        %823 = vmatmul.mubr.f32.gmra.mrb[0].mxu0 %v720
        %v824 = vpop.f32.mrb[0].mxu0
        %v825 = vadd.f32 %v757, %v824
        %v826 = vpop.f32.mrb[0].mxu0
        %827 = vmatprep.mubr.f32.mxu0 0.0
        %828 = vmatmul.mubr.f32.gmra.mrb[0].mxu0 %v721
        %v829 = vpop.f32.mrb[0].mxu0
        %v830 = vadd.f32 %v757, %v829
        %v831 = vpop.f32.mrb[0].mxu0
        %832 = vmatprep.mubr.f32.mxu0 0.0
        %833 = vmatmul.mubr.f32.gmra.mrb[0].mxu0 %v722
        %v834 = vpop.f32.mrb[0].mxu0
        %v835 = vadd.f32 %v757, %v834
        %v836 = vpop.f32.mrb[0].mxu0
        %837 = vmatprep.mubr.f32.mxu0 0.0
        %838 = vmatmul.mubr.f32.gmra.mrb[0].mxu0 %v723
        %v839 = vpop.f32.mrb[0].mxu0
        %v840 = vadd.f32 %v757, %v839
        %v841 = vpop.f32.mrb[0].mxu0
        %842 = vmatprep.mubr.f32.mxu0 0.0
        %843 = vmatmul.mubr.f32.gmra.mrb[0].mxu0 %v724
        %v844 = vpop.f32.mrb[0].mxu0
        %v845 = vadd.f32 %v757, %v844
        %v846 = vpop.f32.mrb[0].mxu0
        %847 = vmatprep.mubr.f32.mxu0 0.0
        %848 = vmatmul.mubr.f32.gmra.mrb[0].mxu0 %v725
        %v849 = vpop.f32.mrb[0].mxu0
        %v850 = vadd.f32 %v757, %v849
        %v851 = vpop.f32.mrb[0].mxu0
        %852 = vmatprep.mubr.f32.mxu0 0.0
        %853 = vmatmul.mubr.f32.gmra.mrb[0].mxu0 %v726
        %v854 = vpop.f32.mrb[0].mxu0
        %v855 = vadd.f32 %v757, %v854
        %v856 = vpop.f32.mrb[0].mxu0
        %857 = vmatprep.mubr.f32.mxu0 0.0
        %858 = vmatmul.mubr.f32.gmra.mrb[0].mxu0 %v727
        %v859 = vpop.f32.mrb[0].mxu0
        %v860 = vadd.f32 %v757, %v859
        %v861 = vpop.f32.mrb[0].mxu0
        %862 = vdwg.mxu0
        %863 = vmatprep.subr.mxu0 0.0
        %864 = vmatpush1.msra.mxu0 %v737
        %865 = vmatprep.subr.mxu0 0.0
        %866 = vmatpush1.msra.mxu0 %v738
        %867 = vmatprep.subr.mxu0 0.0
        %868 = vmatpush1.msra.mxu0 %v739
        %869 = vmatprep.subr.mxu0 0.0
        %870 = vmatpush1.msra.mxu0 %v740
        %871 = vmatprep.subr.mxu0 0.0
        %872 = vmatpush1.msra.mxu0 %v741
        %873 = vmatprep.subr.mxu0 0.0
        %874 = vmatpush1.msra.mxu0 %v742
        %875 = vmatprep.subr.mxu0 0.0
        %876 = vmatpush1.msra.mxu0 %v743
        %877 = vmatprep.subr.mxu0 0.0
        %878 = vmatpush1.msra.mxu0 %v744
        %879 = vmatprep.subr.mxu0 0.0
        %880 = vmatpush1.msra.mxu0 %v745
        %881 = vmatprep.subr.mxu0 0.0
        %882 = vmatpush1.msra.mxu0 %v746
        %883 = vmatprep.subr.mxu0 0.0
        %884 = vmatpush1.msra.mxu0 %v747
        %885 = vmatprep.subr.mxu0 0.0
        %886 = vmatpush1.msra.mxu0 %v748
        %887 = vmatprep.subr.mxu0 0.0
        %888 = vmatpush1.msra.mxu0 %v749
        %889 = vmatprep.subr.mxu0 0.0
        %890 = vmatpush1.msra.mxu0 %v750
        %891 = vmatprep.subr.mxu0 0.0
        %892 = vmatpush1.msra.mxu0 %v751
        %893 = vmatprep.subr.mxu0 0.0
        %894 = vmatpush1.msra.mxu0 %v752
        %895 = vmatprep.subr.mxu0 0.0
        %896 = vmatpush1.msra.mxu0 0.0
        %897 = vmatprep.subr.mxu0 0.0
        %898 = vmatpush1.msra.mxu0 0.0
        %899 = vmatprep.subr.mxu0 0.0
        %900 = vmatpush1.msra.mxu0 0.0
        %901 = vmatprep.subr.mxu0 0.0
        %902 = vmatpush1.msra.mxu0 0.0
        %903 = vmatprep.subr.mxu0 0.0
        %904 = vmatpush1.msra.mxu0 0.0
        %905 = vmatprep.subr.mxu0 0.0
        %906 = vmatpush1.msra.mxu0 0.0
        %907 = vmatprep.subr.mxu0 0.0
        %908 = vmatpush1.msra.mxu0 0.0
        %909 = vmatprep.subr.mxu0 0.0
        %910 = vmatpush1.msra.mxu0 0.0
        %911 = vmatprep.subr.mxu0 0.0
        %912 = vmatpush1.msra.mxu0 0.0
        %913 = vmatprep.subr.mxu0 0.0
        %914 = vmatpush1.msra.mxu0 0.0
        %915 = vmatprep.subr.mxu0 0.0
        %916 = vmatpush1.msra.mxu0 0.0
        %917 = vmatprep.subr.mxu0 0.0
        %918 = vmatpush1.msra.mxu0 0.0
        %919 = vmatprep.subr.mxu0 0.0
        %920 = vmatpush1.msra.mxu0 0.0
        %921 = vmatprep.subr.mxu0 0.0
        %922 = vmatpush1.msra.mxu0 0.0
        %923 = vmatprep.subr.mxu0 0.0
        %924 = vmatpush1.msra.mxu0 0.0
        %925 = vmatprep.subr.mxu0 0.0
        %926 = vmatpush1.msra.mxu0 0.0
        %927 = vmatprep.mubr.f32.mxu0 0.0
        %928 = vmatmul.mubr.f32.gmra.mrb[0].mxu0 %v728
        %v929 = vpop.f32.mrb[0].mxu0
        %v930 = vadd.f32 %v757, %v929
        %v931 = vpop.f32.mrb[0].mxu0
        %932 = vmatprep.mubr.f32.mxu0 0.0
        %933 = vmatmul.mubr.f32.gmra.mrb[0].mxu0 %v729
        %v934 = vpop.f32.mrb[0].mxu0
        %v935 = vadd.f32 %v757, %v934
        %v936 = vpop.f32.mrb[0].mxu0
        %937 = vmatprep.mubr.f32.mxu0 0.0
        %938 = vmatmul.mubr.f32.gmra.mrb[0].mxu0 %v730
        %v939 = vpop.f32.mrb[0].mxu0
        %v940 = vadd.f32 %v757, %v939
        %v941 = vpop.f32.mrb[0].mxu0
        %942 = vmatprep.mubr.f32.mxu0 0.0
        %943 = vmatmul.mubr.f32.gmra.mrb[0].mxu0 %v731
        %v944 = vpop.f32.mrb[0].mxu0
        %v945 = vadd.f32 %v757, %v944
        %v946 = vpop.f32.mrb[0].mxu0
        %947 = vmatprep.mubr.f32.mxu0 0.0
        %948 = vmatmul.mubr.f32.gmra.mrb[0].mxu0 %v732
        %v949 = vpop.f32.mrb[0].mxu0
        %v950 = vadd.f32 %v757, %v949
        %v951 = vpop.f32.mrb[0].mxu0
        %952 = vmatprep.mubr.f32.mxu0 0.0
        %953 = vmatmul.mubr.f32.gmra.mrb[0].mxu0 %v733
        %v954 = vpop.f32.mrb[0].mxu0
        %v955 = vadd.f32 %v757, %v954
        %v956 = vpop.f32.mrb[0].mxu0
        %957 = vmatprep.mubr.f32.mxu0 0.0
        %958 = vmatmul.mubr.f32.gmra.mrb[0].mxu0 %v734
        %v959 = vpop.f32.mrb[0].mxu0
        %v960 = vadd.f32 %v757, %v959
        %v961 = vpop.f32.mrb[0].mxu0
        %962 = vmatprep.mubr.f32.mxu0 0.0
        %963 = vmatmul.mubr.f32.gmra.mrb[0].mxu0 %v735
        %v964 = vpop.f32.mrb[0].mxu0
        %v965 = vadd.f32 %v757, %v964
        %v966 = vpop.f32.mrb[0].mxu0
        %967 = vdwg.mxu0
        %v968 = vtanh.pop %v825
        %v969 = vtanh.pop %v830
        %v970 = vtanh.pop %v835
        %v971 = vtanh.pop %v840
        %v972 = vtanh.pop %v845
        %v973 = vtanh.pop %v850
        %v974 = vtanh.pop %v855
        %v975 = vtanh.pop %v860
        %v976 = vtanh.pop %v930
        %v977 = vtanh.pop %v935
        %v978 = vtanh.pop %v940
        %v979 = vtanh.pop %v945
        %v980 = vtanh.pop %v950
        %v981 = vtanh.pop %v955
        %v982 = vtanh.pop %v960
        %v983 = vtanh.pop %v965
        %s984 = scalar_lea.vmem [#allocation2], 384
        %v985 = vld [vmem:[%s984] sm:$0xff]
        %v986 = vld [vmem:[%s984 + $0x8] sm:$0xff]
        %v987 = vld [vmem:[%s984 + $0x10] sm:$0xff]
        %v988 = vld [vmem:[%s984 + $0x18] sm:$0xff]
        %v989 = vld [vmem:[%s984 + $0x20] sm:$0xff]
        %v990 = vld [vmem:[%s984 + $0x28] sm:$0xff]
        %v991 = vld [vmem:[%s984 + $0x30] sm:$0xff]
        %v992 = vld [vmem:[%s984 + $0x38] sm:$0xff]
        %v993 = vld [vmem:[%s984 + $0x40] sm:$0xff]
        %v994 = vld [vmem:[%s984 + $0x48] sm:$0xff]
        %v995 = vld [vmem:[%s984 + $0x50] sm:$0xff]
        %v996 = vld [vmem:[%s984 + $0x58] sm:$0xff]
        %v997 = vld [vmem:[%s984 + $0x60] sm:$0xff]
        %v998 = vld [vmem:[%s984 + $0x68] sm:$0xff]
        %v999 = vld [vmem:[%s984 + $0x70] sm:$0xff]
        %v1000 = vld [vmem:[%s984 + $0x78] sm:$0xff]
        %v1001 = vld [vmem:[%s2 + $0x3] sm:$0x1]
        %v1002 = vlaneseq
        %v1003 = vshrl.u32 %v1002, 7
        %v1004 = vsub.s32 0, %v1003
        %v1005 = vrot.slane %v1001, %v1004
        %1006 = vmatprep.subr.mxu0 0.0
        %1007 = vmatpush1.msra.mxu0 %v985
        %1008 = vmatprep.subr.mxu0 0.0
        %1009 = vmatpush1.msra.mxu0 %v986
        %1010 = vmatprep.subr.mxu0 0.0
        %1011 = vmatpush1.msra.mxu0 %v987
        %1012 = vmatprep.subr.mxu0 0.0
        %1013 = vmatpush1.msra.mxu0 %v988
        %1014 = vmatprep.subr.mxu0 0.0
        %1015 = vmatpush1.msra.mxu0 %v989
        %1016 = vmatprep.subr.mxu0 0.0
        %1017 = vmatpush1.msra.mxu0 %v990
        %1018 = vmatprep.subr.mxu0 0.0
        %1019 = vmatpush1.msra.mxu0 %v991
        %1020 = vmatprep.subr.mxu0 0.0
        %1021 = vmatpush1.msra.mxu0 %v992
        %1022 = vmatprep.subr.mxu0 0.0
        %1023 = vmatpush1.msra.mxu0 %v993
        %1024 = vmatprep.subr.mxu0 0.0
        %1025 = vmatpush1.msra.mxu0 %v994
        %1026 = vmatprep.subr.mxu0 0.0
        %1027 = vmatpush1.msra.mxu0 %v995
        %1028 = vmatprep.subr.mxu0 0.0
        %1029 = vmatpush1.msra.mxu0 %v996
        %1030 = vmatprep.subr.mxu0 0.0
        %1031 = vmatpush1.msra.mxu0 %v997
        %1032 = vmatprep.subr.mxu0 0.0
        %1033 = vmatpush1.msra.mxu0 %v998
        %1034 = vmatprep.subr.mxu0 0.0
        %1035 = vmatpush1.msra.mxu0 %v999
        %1036 = vmatprep.subr.mxu0 0.0
        %1037 = vmatpush1.msra.mxu0 %v1000
        %1038 = vmatprep.subr.mxu0 0.0
        %1039 = vmatpush1.msra.mxu0 0.0
        %1040 = vmatprep.subr.mxu0 0.0
        %1041 = vmatpush1.msra.mxu0 0.0
        %1042 = vmatprep.subr.mxu0 0.0
        %1043 = vmatpush1.msra.mxu0 0.0
        %1044 = vmatprep.subr.mxu0 0.0
        %1045 = vmatpush1.msra.mxu0 0.0
        %1046 = vmatprep.subr.mxu0 0.0
        %1047 = vmatpush1.msra.mxu0 0.0
        %1048 = vmatprep.subr.mxu0 0.0
        %1049 = vmatpush1.msra.mxu0 0.0
        %1050 = vmatprep.subr.mxu0 0.0
        %1051 = vmatpush1.msra.mxu0 0.0
        %1052 = vmatprep.subr.mxu0 0.0
        %1053 = vmatpush1.msra.mxu0 0.0
        %1054 = vmatprep.subr.mxu0 0.0
        %1055 = vmatpush1.msra.mxu0 0.0
        %1056 = vmatprep.subr.mxu0 0.0
        %1057 = vmatpush1.msra.mxu0 0.0
        %1058 = vmatprep.subr.mxu0 0.0
        %1059 = vmatpush1.msra.mxu0 0.0
        %1060 = vmatprep.subr.mxu0 0.0
        %1061 = vmatpush1.msra.mxu0 0.0
        %1062 = vmatprep.subr.mxu0 0.0
        %1063 = vmatpush1.msra.mxu0 0.0
        %1064 = vmatprep.subr.mxu0 0.0
        %1065 = vmatpush1.msra.mxu0 0.0
        %1066 = vmatprep.subr.mxu0 0.0
        %1067 = vmatpush1.msra.mxu0 0.0
        %1068 = vmatprep.subr.mxu0 0.0
        %1069 = vmatpush1.msra.mxu0 0.0
        %1070 = vmatprep.mubr.f32.mxu0 0.0
        %1071 = vmatmul.mubr.f32.gmra.mrb[0].mxu0 %v968
        %v1072 = vpop.f32.mrb[0].mxu0
        %v1073 = vadd.f32 %v1005, %v1072
        %v1074 = vpop.f32.mrb[0].mxu0
        %1075 = vmatprep.mubr.f32.mxu0 0.0
        %1076 = vmatmul.mubr.f32.gmra.mrb[0].mxu0 %v969
        %v1077 = vpop.f32.mrb[0].mxu0
        %v1078 = vadd.f32 %v1005, %v1077
        %v1079 = vpop.f32.mrb[0].mxu0
        %1080 = vmatprep.mubr.f32.mxu0 0.0
        %1081 = vmatmul.mubr.f32.gmra.mrb[0].mxu0 %v970
        %v1082 = vpop.f32.mrb[0].mxu0
        %v1083 = vadd.f32 %v1005, %v1082
        %v1084 = vpop.f32.mrb[0].mxu0
        %1085 = vmatprep.mubr.f32.mxu0 0.0
        %1086 = vmatmul.mubr.f32.gmra.mrb[0].mxu0 %v971
        %v1087 = vpop.f32.mrb[0].mxu0
        %v1088 = vadd.f32 %v1005, %v1087
        %v1089 = vpop.f32.mrb[0].mxu0
        %1090 = vmatprep.mubr.f32.mxu0 0.0
        %1091 = vmatmul.mubr.f32.gmra.mrb[0].mxu0 %v972
        %v1092 = vpop.f32.mrb[0].mxu0
        %v1093 = vadd.f32 %v1005, %v1092
        %v1094 = vpop.f32.mrb[0].mxu0
        %1095 = vmatprep.mubr.f32.mxu0 0.0
        %1096 = vmatmul.mubr.f32.gmra.mrb[0].mxu0 %v973
        %v1097 = vpop.f32.mrb[0].mxu0
        %v1098 = vadd.f32 %v1005, %v1097
        %v1099 = vpop.f32.mrb[0].mxu0
        %1100 = vmatprep.mubr.f32.mxu0 0.0
        %1101 = vmatmul.mubr.f32.gmra.mrb[0].mxu0 %v974
        %v1102 = vpop.f32.mrb[0].mxu0
        %v1103 = vadd.f32 %v1005, %v1102
        %v1104 = vpop.f32.mrb[0].mxu0
        %1105 = vmatprep.mubr.f32.mxu0 0.0
        %1106 = vmatmul.mubr.f32.gmra.mrb[0].mxu0 %v975
        %v1107 = vpop.f32.mrb[0].mxu0
        %v1108 = vadd.f32 %v1005, %v1107
        %v1109 = vpop.f32.mrb[0].mxu0
        %1110 = vdwg.mxu0
        %1111 = vmatprep.subr.mxu0 0.0
        %1112 = vmatpush1.msra.mxu0 %v985
        %1113 = vmatprep.subr.mxu0 0.0
        %1114 = vmatpush1.msra.mxu0 %v986
        %1115 = vmatprep.subr.mxu0 0.0
        %1116 = vmatpush1.msra.mxu0 %v987
        %1117 = vmatprep.subr.mxu0 0.0
        %1118 = vmatpush1.msra.mxu0 %v988
        %1119 = vmatprep.subr.mxu0 0.0
        %1120 = vmatpush1.msra.mxu0 %v989
        %1121 = vmatprep.subr.mxu0 0.0
        %1122 = vmatpush1.msra.mxu0 %v990
        %1123 = vmatprep.subr.mxu0 0.0
        %1124 = vmatpush1.msra.mxu0 %v991
        %1125 = vmatprep.subr.mxu0 0.0
        %1126 = vmatpush1.msra.mxu0 %v992
        %1127 = vmatprep.subr.mxu0 0.0
        %1128 = vmatpush1.msra.mxu0 %v993
        %1129 = vmatprep.subr.mxu0 0.0
        %1130 = vmatpush1.msra.mxu0 %v994
        %1131 = vmatprep.subr.mxu0 0.0
        %1132 = vmatpush1.msra.mxu0 %v995
        %1133 = vmatprep.subr.mxu0 0.0
        %1134 = vmatpush1.msra.mxu0 %v996
        %1135 = vmatprep.subr.mxu0 0.0
        %1136 = vmatpush1.msra.mxu0 %v997
        %1137 = vmatprep.subr.mxu0 0.0
        %1138 = vmatpush1.msra.mxu0 %v998
        %1139 = vmatprep.subr.mxu0 0.0
        %1140 = vmatpush1.msra.mxu0 %v999
        %1141 = vmatprep.subr.mxu0 0.0
        %1142 = vmatpush1.msra.mxu0 %v1000
        %1143 = vmatprep.subr.mxu0 0.0
        %1144 = vmatpush1.msra.mxu0 0.0
        %1145 = vmatprep.subr.mxu0 0.0
        %1146 = vmatpush1.msra.mxu0 0.0
        %1147 = vmatprep.subr.mxu0 0.0
        %1148 = vmatpush1.msra.mxu0 0.0
        %1149 = vmatprep.subr.mxu0 0.0
        %1150 = vmatpush1.msra.mxu0 0.0
        %1151 = vmatprep.subr.mxu0 0.0
        %1152 = vmatpush1.msra.mxu0 0.0
        %1153 = vmatprep.subr.mxu0 0.0
        %1154 = vmatpush1.msra.mxu0 0.0
        %1155 = vmatprep.subr.mxu0 0.0
        %1156 = vmatpush1.msra.mxu0 0.0
        %1157 = vmatprep.subr.mxu0 0.0
        %1158 = vmatpush1.msra.mxu0 0.0
        %1159 = vmatprep.subr.mxu0 0.0
        %1160 = vmatpush1.msra.mxu0 0.0
        %1161 = vmatprep.subr.mxu0 0.0
        %1162 = vmatpush1.msra.mxu0 0.0
        %1163 = vmatprep.subr.mxu0 0.0
        %1164 = vmatpush1.msra.mxu0 0.0
        %1165 = vmatprep.subr.mxu0 0.0
        %1166 = vmatpush1.msra.mxu0 0.0
        %1167 = vmatprep.subr.mxu0 0.0
        %1168 = vmatpush1.msra.mxu0 0.0
        %1169 = vmatprep.subr.mxu0 0.0
        %1170 = vmatpush1.msra.mxu0 0.0
        %1171 = vmatprep.subr.mxu0 0.0
        %1172 = vmatpush1.msra.mxu0 0.0
        %1173 = vmatprep.subr.mxu0 0.0
        %1174 = vmatpush1.msra.mxu0 0.0
        %1175 = vmatprep.mubr.f32.mxu0 0.0
        %1176 = vmatmul.mubr.f32.gmra.mrb[0].mxu0 %v976
        %v1177 = vpop.f32.mrb[0].mxu0
        %v1178 = vadd.f32 %v1005, %v1177
        %v1179 = vpop.f32.mrb[0].mxu0
        %1180 = vmatprep.mubr.f32.mxu0 0.0
        %1181 = vmatmul.mubr.f32.gmra.mrb[0].mxu0 %v977
        %v1182 = vpop.f32.mrb[0].mxu0
        %v1183 = vadd.f32 %v1005, %v1182
        %v1184 = vpop.f32.mrb[0].mxu0
        %1185 = vmatprep.mubr.f32.mxu0 0.0
        %1186 = vmatmul.mubr.f32.gmra.mrb[0].mxu0 %v978
        %v1187 = vpop.f32.mrb[0].mxu0
        %v1188 = vadd.f32 %v1005, %v1187
        %v1189 = vpop.f32.mrb[0].mxu0
        %1190 = vmatprep.mubr.f32.mxu0 0.0
        %1191 = vmatmul.mubr.f32.gmra.mrb[0].mxu0 %v979
        %v1192 = vpop.f32.mrb[0].mxu0
        %v1193 = vadd.f32 %v1005, %v1192
        %v1194 = vpop.f32.mrb[0].mxu0
        %1195 = vmatprep.mubr.f32.mxu0 0.0
        %1196 = vmatmul.mubr.f32.gmra.mrb[0].mxu0 %v980
        %v1197 = vpop.f32.mrb[0].mxu0
        %v1198 = vadd.f32 %v1005, %v1197
        %v1199 = vpop.f32.mrb[0].mxu0
        %1200 = vmatprep.mubr.f32.mxu0 0.0
        %1201 = vmatmul.mubr.f32.gmra.mrb[0].mxu0 %v981
        %v1202 = vpop.f32.mrb[0].mxu0
        %v1203 = vadd.f32 %v1005, %v1202
        %v1204 = vpop.f32.mrb[0].mxu0
        %1205 = vmatprep.mubr.f32.mxu0 0.0
        %1206 = vmatmul.mubr.f32.gmra.mrb[0].mxu0 %v982
        %v1207 = vpop.f32.mrb[0].mxu0
        %v1208 = vadd.f32 %v1005, %v1207
        %v1209 = vpop.f32.mrb[0].mxu0
        %1210 = vmatprep.mubr.f32.mxu0 0.0
        %1211 = vmatmul.mubr.f32.gmra.mrb[0].mxu0 %v983
        %v1212 = vpop.f32.mrb[0].mxu0
        %v1213 = vadd.f32 %v1005, %v1212
        %v1214 = vpop.f32.mrb[0].mxu0
        %1215 = vdwg.mxu0
        %v1216 = vtanh.pop %v1073
        %v1217 = vtanh.pop %v1078
        %v1218 = vtanh.pop %v1083
        %v1219 = vtanh.pop %v1088
        %v1220 = vtanh.pop %v1093
        %v1221 = vtanh.pop %v1098
        %v1222 = vtanh.pop %v1103
        %v1223 = vtanh.pop %v1108
        %v1224 = vtanh.pop %v1178
        %v1225 = vtanh.pop %v1183
        %v1226 = vtanh.pop %v1188
        %v1227 = vtanh.pop %v1193
        %v1228 = vtanh.pop %v1198
        %v1229 = vtanh.pop %v1203
        %v1230 = vtanh.pop %v1208
        %v1231 = vtanh.pop %v1213
        %s1232 = scalar_lea.vmem [#allocation2], 512
        %v1233 = vld [vmem:[%s1232] sm:$0xff]
        %v1234 = vld [vmem:[%s1232 + $0x8] sm:$0xff]
        %v1235 = vld [vmem:[%s1232 + $0x10] sm:$0xff]
        %v1236 = vld [vmem:[%s1232 + $0x18] sm:$0xff]
        %v1237 = vld [vmem:[%s1232 + $0x20] sm:$0xff]
        %v1238 = vld [vmem:[%s1232 + $0x28] sm:$0xff]
        %v1239 = vld [vmem:[%s1232 + $0x30] sm:$0xff]
        %v1240 = vld [vmem:[%s1232 + $0x38] sm:$0xff]
        %v1241 = vld [vmem:[%s1232 + $0x40] sm:$0xff]
        %v1242 = vld [vmem:[%s1232 + $0x48] sm:$0xff]
        %v1243 = vld [vmem:[%s1232 + $0x50] sm:$0xff]
        %v1244 = vld [vmem:[%s1232 + $0x58] sm:$0xff]
        %v1245 = vld [vmem:[%s1232 + $0x60] sm:$0xff]
        %v1246 = vld [vmem:[%s1232 + $0x68] sm:$0xff]
        %v1247 = vld [vmem:[%s1232 + $0x70] sm:$0xff]
        %v1248 = vld [vmem:[%s1232 + $0x78] sm:$0xff]
        %v1249 = vld [vmem:[%s2 + $0x4] sm:$0x1]
        %v1250 = vlaneseq
        %v1251 = vshrl.u32 %v1250, 7
        %v1252 = vsub.s32 0, %v1251
        %v1253 = vrot.slane %v1249, %v1252
        %1254 = vmatprep.subr.mxu0 0.0
        %1255 = vmatpush1.msra.mxu0 %v1233
        %1256 = vmatprep.subr.mxu0 0.0
        %1257 = vmatpush1.msra.mxu0 %v1234
        %1258 = vmatprep.subr.mxu0 0.0
        %1259 = vmatpush1.msra.mxu0 %v1235
        %1260 = vmatprep.subr.mxu0 0.0
        %1261 = vmatpush1.msra.mxu0 %v1236
        %1262 = vmatprep.subr.mxu0 0.0
        %1263 = vmatpush1.msra.mxu0 %v1237
        %1264 = vmatprep.subr.mxu0 0.0
        %1265 = vmatpush1.msra.mxu0 %v1238
        %1266 = vmatprep.subr.mxu0 0.0
        %1267 = vmatpush1.msra.mxu0 %v1239
        %1268 = vmatprep.subr.mxu0 0.0
        %1269 = vmatpush1.msra.mxu0 %v1240
        %1270 = vmatprep.subr.mxu0 0.0
        %1271 = vmatpush1.msra.mxu0 %v1241
        %1272 = vmatprep.subr.mxu0 0.0
        %1273 = vmatpush1.msra.mxu0 %v1242
        %1274 = vmatprep.subr.mxu0 0.0
        %1275 = vmatpush1.msra.mxu0 %v1243
        %1276 = vmatprep.subr.mxu0 0.0
        %1277 = vmatpush1.msra.mxu0 %v1244
        %1278 = vmatprep.subr.mxu0 0.0
        %1279 = vmatpush1.msra.mxu0 %v1245
        %1280 = vmatprep.subr.mxu0 0.0
        %1281 = vmatpush1.msra.mxu0 %v1246
        %1282 = vmatprep.subr.mxu0 0.0
        %1283 = vmatpush1.msra.mxu0 %v1247
        %1284 = vmatprep.subr.mxu0 0.0
        %1285 = vmatpush1.msra.mxu0 %v1248
        %1286 = vmatprep.subr.mxu0 0.0
        %1287 = vmatpush1.msra.mxu0 0.0
        %1288 = vmatprep.subr.mxu0 0.0
        %1289 = vmatpush1.msra.mxu0 0.0
        %1290 = vmatprep.subr.mxu0 0.0
        %1291 = vmatpush1.msra.mxu0 0.0
        %1292 = vmatprep.subr.mxu0 0.0
        %1293 = vmatpush1.msra.mxu0 0.0
        %1294 = vmatprep.subr.mxu0 0.0
        %1295 = vmatpush1.msra.mxu0 0.0
        %1296 = vmatprep.subr.mxu0 0.0
        %1297 = vmatpush1.msra.mxu0 0.0
        %1298 = vmatprep.subr.mxu0 0.0
        %1299 = vmatpush1.msra.mxu0 0.0
        %1300 = vmatprep.subr.mxu0 0.0
        %1301 = vmatpush1.msra.mxu0 0.0
        %1302 = vmatprep.subr.mxu0 0.0
        %1303 = vmatpush1.msra.mxu0 0.0
        %1304 = vmatprep.subr.mxu0 0.0
        %1305 = vmatpush1.msra.mxu0 0.0
        %1306 = vmatprep.subr.mxu0 0.0
        %1307 = vmatpush1.msra.mxu0 0.0
        %1308 = vmatprep.subr.mxu0 0.0
        %1309 = vmatpush1.msra.mxu0 0.0
        %1310 = vmatprep.subr.mxu0 0.0
        %1311 = vmatpush1.msra.mxu0 0.0
        %1312 = vmatprep.subr.mxu0 0.0
        %1313 = vmatpush1.msra.mxu0 0.0
        %1314 = vmatprep.subr.mxu0 0.0
        %1315 = vmatpush1.msra.mxu0 0.0
        %1316 = vmatprep.subr.mxu0 0.0
        %1317 = vmatpush1.msra.mxu0 0.0
        %1318 = vmatprep.mubr.f32.mxu0 0.0
        %1319 = vmatmul.mubr.f32.gmra.mrb[0].mxu0 %v1216
        %v1320 = vpop.f32.mrb[0].mxu0
        %v1321 = vadd.f32 %v1253, %v1320
        %v1322 = vpop.f32.mrb[0].mxu0
        %1323 = vmatprep.mubr.f32.mxu0 0.0
        %1324 = vmatmul.mubr.f32.gmra.mrb[0].mxu0 %v1217
        %v1325 = vpop.f32.mrb[0].mxu0
        %v1326 = vadd.f32 %v1253, %v1325
        %v1327 = vpop.f32.mrb[0].mxu0
        %1328 = vmatprep.mubr.f32.mxu0 0.0
        %1329 = vmatmul.mubr.f32.gmra.mrb[0].mxu0 %v1218
        %v1330 = vpop.f32.mrb[0].mxu0
        %v1331 = vadd.f32 %v1253, %v1330
        %v1332 = vpop.f32.mrb[0].mxu0
        %1333 = vmatprep.mubr.f32.mxu0 0.0
        %1334 = vmatmul.mubr.f32.gmra.mrb[0].mxu0 %v1219
        %v1335 = vpop.f32.mrb[0].mxu0
        %v1336 = vadd.f32 %v1253, %v1335
        %v1337 = vpop.f32.mrb[0].mxu0
        %1338 = vmatprep.mubr.f32.mxu0 0.0
        %1339 = vmatmul.mubr.f32.gmra.mrb[0].mxu0 %v1220
        %v1340 = vpop.f32.mrb[0].mxu0
        %v1341 = vadd.f32 %v1253, %v1340
        %v1342 = vpop.f32.mrb[0].mxu0
        %1343 = vmatprep.mubr.f32.mxu0 0.0
        %1344 = vmatmul.mubr.f32.gmra.mrb[0].mxu0 %v1221
        %v1345 = vpop.f32.mrb[0].mxu0
        %v1346 = vadd.f32 %v1253, %v1345
        %v1347 = vpop.f32.mrb[0].mxu0
        %1348 = vmatprep.mubr.f32.mxu0 0.0
        %1349 = vmatmul.mubr.f32.gmra.mrb[0].mxu0 %v1222
        %v1350 = vpop.f32.mrb[0].mxu0
        %v1351 = vadd.f32 %v1253, %v1350
        %v1352 = vpop.f32.mrb[0].mxu0
        %1353 = vmatprep.mubr.f32.mxu0 0.0
        %1354 = vmatmul.mubr.f32.gmra.mrb[0].mxu0 %v1223
        %v1355 = vpop.f32.mrb[0].mxu0
        %v1356 = vadd.f32 %v1253, %v1355
        %v1357 = vpop.f32.mrb[0].mxu0
        %1358 = vdwg.mxu0
        %1359 = vmatprep.subr.mxu0 0.0
        %1360 = vmatpush1.msra.mxu0 %v1233
        %1361 = vmatprep.subr.mxu0 0.0
        %1362 = vmatpush1.msra.mxu0 %v1234
        %1363 = vmatprep.subr.mxu0 0.0
        %1364 = vmatpush1.msra.mxu0 %v1235
        %1365 = vmatprep.subr.mxu0 0.0
        %1366 = vmatpush1.msra.mxu0 %v1236
        %1367 = vmatprep.subr.mxu0 0.0
        %1368 = vmatpush1.msra.mxu0 %v1237
        %1369 = vmatprep.subr.mxu0 0.0
        %1370 = vmatpush1.msra.mxu0 %v1238
        %1371 = vmatprep.subr.mxu0 0.0
        %1372 = vmatpush1.msra.mxu0 %v1239
        %1373 = vmatprep.subr.mxu0 0.0
        %1374 = vmatpush1.msra.mxu0 %v1240
        %1375 = vmatprep.subr.mxu0 0.0
        %1376 = vmatpush1.msra.mxu0 %v1241
        %1377 = vmatprep.subr.mxu0 0.0
        %1378 = vmatpush1.msra.mxu0 %v1242
        %1379 = vmatprep.subr.mxu0 0.0
        %1380 = vmatpush1.msra.mxu0 %v1243
        %1381 = vmatprep.subr.mxu0 0.0
        %1382 = vmatpush1.msra.mxu0 %v1244
        %1383 = vmatprep.subr.mxu0 0.0
        %1384 = vmatpush1.msra.mxu0 %v1245
        %1385 = vmatprep.subr.mxu0 0.0
        %1386 = vmatpush1.msra.mxu0 %v1246
        %1387 = vmatprep.subr.mxu0 0.0
        %1388 = vmatpush1.msra.mxu0 %v1247
        %1389 = vmatprep.subr.mxu0 0.0
        %1390 = vmatpush1.msra.mxu0 %v1248
        %1391 = vmatprep.subr.mxu0 0.0
        %1392 = vmatpush1.msra.mxu0 0.0
        %1393 = vmatprep.subr.mxu0 0.0
        %1394 = vmatpush1.msra.mxu0 0.0
        %1395 = vmatprep.subr.mxu0 0.0
        %1396 = vmatpush1.msra.mxu0 0.0
        %1397 = vmatprep.subr.mxu0 0.0
        %1398 = vmatpush1.msra.mxu0 0.0
        %1399 = vmatprep.subr.mxu0 0.0
        %1400 = vmatpush1.msra.mxu0 0.0
        %1401 = vmatprep.subr.mxu0 0.0
        %1402 = vmatpush1.msra.mxu0 0.0
        %1403 = vmatprep.subr.mxu0 0.0
        %1404 = vmatpush1.msra.mxu0 0.0
        %1405 = vmatprep.subr.mxu0 0.0
        %1406 = vmatpush1.msra.mxu0 0.0
        %1407 = vmatprep.subr.mxu0 0.0
        %1408 = vmatpush1.msra.mxu0 0.0
        %1409 = vmatprep.subr.mxu0 0.0
        %1410 = vmatpush1.msra.mxu0 0.0
        %1411 = vmatprep.subr.mxu0 0.0
        %1412 = vmatpush1.msra.mxu0 0.0
        %1413 = vmatprep.subr.mxu0 0.0
        %1414 = vmatpush1.msra.mxu0 0.0
        %1415 = vmatprep.subr.mxu0 0.0
        %1416 = vmatpush1.msra.mxu0 0.0
        %1417 = vmatprep.subr.mxu0 0.0
        %1418 = vmatpush1.msra.mxu0 0.0
        %1419 = vmatprep.subr.mxu0 0.0
        %1420 = vmatpush1.msra.mxu0 0.0
        %1421 = vmatprep.subr.mxu0 0.0
        %1422 = vmatpush1.msra.mxu0 0.0
        %1423 = vmatprep.mubr.f32.mxu0 0.0
        %1424 = vmatmul.mubr.f32.gmra.mrb[0].mxu0 %v1224
        %v1425 = vpop.f32.mrb[0].mxu0
        %v1426 = vadd.f32 %v1253, %v1425
        %v1427 = vpop.f32.mrb[0].mxu0
        %1428 = vmatprep.mubr.f32.mxu0 0.0
        %1429 = vmatmul.mubr.f32.gmra.mrb[0].mxu0 %v1225
        %v1430 = vpop.f32.mrb[0].mxu0
        %v1431 = vadd.f32 %v1253, %v1430
        %v1432 = vpop.f32.mrb[0].mxu0
        %1433 = vmatprep.mubr.f32.mxu0 0.0
        %1434 = vmatmul.mubr.f32.gmra.mrb[0].mxu0 %v1226
        %v1435 = vpop.f32.mrb[0].mxu0
        %v1436 = vadd.f32 %v1253, %v1435
        %v1437 = vpop.f32.mrb[0].mxu0
        %1438 = vmatprep.mubr.f32.mxu0 0.0
        %1439 = vmatmul.mubr.f32.gmra.mrb[0].mxu0 %v1227
        %v1440 = vpop.f32.mrb[0].mxu0
        %v1441 = vadd.f32 %v1253, %v1440
        %v1442 = vpop.f32.mrb[0].mxu0
        %1443 = vmatprep.mubr.f32.mxu0 0.0
        %1444 = vmatmul.mubr.f32.gmra.mrb[0].mxu0 %v1228
        %v1445 = vpop.f32.mrb[0].mxu0
        %v1446 = vadd.f32 %v1253, %v1445
        %v1447 = vpop.f32.mrb[0].mxu0
        %1448 = vmatprep.mubr.f32.mxu0 0.0
        %1449 = vmatmul.mubr.f32.gmra.mrb[0].mxu0 %v1229
        %v1450 = vpop.f32.mrb[0].mxu0
        %v1451 = vadd.f32 %v1253, %v1450
        %v1452 = vpop.f32.mrb[0].mxu0
        %1453 = vmatprep.mubr.f32.mxu0 0.0
        %1454 = vmatmul.mubr.f32.gmra.mrb[0].mxu0 %v1230
        %v1455 = vpop.f32.mrb[0].mxu0
        %v1456 = vadd.f32 %v1253, %v1455
        %v1457 = vpop.f32.mrb[0].mxu0
        %1458 = vmatprep.mubr.f32.mxu0 0.0
        %1459 = vmatmul.mubr.f32.gmra.mrb[0].mxu0 %v1231
        %v1460 = vpop.f32.mrb[0].mxu0
        %v1461 = vadd.f32 %v1253, %v1460
        %v1462 = vpop.f32.mrb[0].mxu0
        %1463 = vdwg.mxu0
        %v1464 = vtanh.pop %v1321
        %v1465 = vtanh.pop %v1326
        %v1466 = vtanh.pop %v1331
        %v1467 = vtanh.pop %v1336
        %v1468 = vtanh.pop %v1341
        %v1469 = vtanh.pop %v1346
        %v1470 = vtanh.pop %v1351
        %v1471 = vtanh.pop %v1356
        %v1472 = vtanh.pop %v1426
        %v1473 = vtanh.pop %v1431
        %v1474 = vtanh.pop %v1436
        %v1475 = vtanh.pop %v1441
        %v1476 = vtanh.pop %v1446
        %v1477 = vtanh.pop %v1451
        %v1478 = vtanh.pop %v1456
        %v1479 = vtanh.pop %v1461
        %s1480 = scalar_lea.vmem [#allocation2], 640
        %v1481 = vld [vmem:[%s1480] sm:$0xff]
        %v1482 = vld [vmem:[%s1480 + $0x8] sm:$0xff]
        %v1483 = vld [vmem:[%s1480 + $0x10] sm:$0xff]
        %v1484 = vld [vmem:[%s1480 + $0x18] sm:$0xff]
        %v1485 = vld [vmem:[%s1480 + $0x20] sm:$0xff]
        %v1486 = vld [vmem:[%s1480 + $0x28] sm:$0xff]
        %v1487 = vld [vmem:[%s1480 + $0x30] sm:$0xff]
        %v1488 = vld [vmem:[%s1480 + $0x38] sm:$0xff]
        %v1489 = vld [vmem:[%s1480 + $0x40] sm:$0xff]
        %v1490 = vld [vmem:[%s1480 + $0x48] sm:$0xff]
        %v1491 = vld [vmem:[%s1480 + $0x50] sm:$0xff]
        %v1492 = vld [vmem:[%s1480 + $0x58] sm:$0xff]
        %v1493 = vld [vmem:[%s1480 + $0x60] sm:$0xff]
        %v1494 = vld [vmem:[%s1480 + $0x68] sm:$0xff]
        %v1495 = vld [vmem:[%s1480 + $0x70] sm:$0xff]
        %v1496 = vld [vmem:[%s1480 + $0x78] sm:$0xff]
        %v1497 = vld [vmem:[%s2 + $0x5] sm:$0x1]
        %v1498 = vlaneseq
        %v1499 = vshrl.u32 %v1498, 7
        %v1500 = vsub.s32 0, %v1499
        %v1501 = vrot.slane %v1497, %v1500
        %1502 = vmatprep.subr.mxu0 0.0
        %1503 = vmatpush1.msra.mxu0 %v1481
        %1504 = vmatprep.subr.mxu0 0.0
        %1505 = vmatpush1.msra.mxu0 %v1482
        %1506 = vmatprep.subr.mxu0 0.0
        %1507 = vmatpush1.msra.mxu0 %v1483
        %1508 = vmatprep.subr.mxu0 0.0
        %1509 = vmatpush1.msra.mxu0 %v1484
        %1510 = vmatprep.subr.mxu0 0.0
        %1511 = vmatpush1.msra.mxu0 %v1485
        %1512 = vmatprep.subr.mxu0 0.0
        %1513 = vmatpush1.msra.mxu0 %v1486
        %1514 = vmatprep.subr.mxu0 0.0
        %1515 = vmatpush1.msra.mxu0 %v1487
        %1516 = vmatprep.subr.mxu0 0.0
        %1517 = vmatpush1.msra.mxu0 %v1488
        %1518 = vmatprep.subr.mxu0 0.0
        %1519 = vmatpush1.msra.mxu0 %v1489
        %1520 = vmatprep.subr.mxu0 0.0
        %1521 = vmatpush1.msra.mxu0 %v1490
        %1522 = vmatprep.subr.mxu0 0.0
        %1523 = vmatpush1.msra.mxu0 %v1491
        %1524 = vmatprep.subr.mxu0 0.0
        %1525 = vmatpush1.msra.mxu0 %v1492
        %1526 = vmatprep.subr.mxu0 0.0
        %1527 = vmatpush1.msra.mxu0 %v1493
        %1528 = vmatprep.subr.mxu0 0.0
        %1529 = vmatpush1.msra.mxu0 %v1494
        %1530 = vmatprep.subr.mxu0 0.0
        %1531 = vmatpush1.msra.mxu0 %v1495
        %1532 = vmatprep.subr.mxu0 0.0
        %1533 = vmatpush1.msra.mxu0 %v1496
        %1534 = vmatprep.subr.mxu0 0.0
        %1535 = vmatpush1.msra.mxu0 0.0
        %1536 = vmatprep.subr.mxu0 0.0
        %1537 = vmatpush1.msra.mxu0 0.0
        %1538 = vmatprep.subr.mxu0 0.0
        %1539 = vmatpush1.msra.mxu0 0.0
        %1540 = vmatprep.subr.mxu0 0.0
        %1541 = vmatpush1.msra.mxu0 0.0
        %1542 = vmatprep.subr.mxu0 0.0
        %1543 = vmatpush1.msra.mxu0 0.0
        %1544 = vmatprep.subr.mxu0 0.0
        %1545 = vmatpush1.msra.mxu0 0.0
        %1546 = vmatprep.subr.mxu0 0.0
        %1547 = vmatpush1.msra.mxu0 0.0
        %1548 = vmatprep.subr.mxu0 0.0
        %1549 = vmatpush1.msra.mxu0 0.0
        %1550 = vmatprep.subr.mxu0 0.0
        %1551 = vmatpush1.msra.mxu0 0.0
        %1552 = vmatprep.subr.mxu0 0.0
        %1553 = vmatpush1.msra.mxu0 0.0
        %1554 = vmatprep.subr.mxu0 0.0
        %1555 = vmatpush1.msra.mxu0 0.0
        %1556 = vmatprep.subr.mxu0 0.0
        %1557 = vmatpush1.msra.mxu0 0.0
        %1558 = vmatprep.subr.mxu0 0.0
        %1559 = vmatpush1.msra.mxu0 0.0
        %1560 = vmatprep.subr.mxu0 0.0
        %1561 = vmatpush1.msra.mxu0 0.0
        %1562 = vmatprep.subr.mxu0 0.0
        %1563 = vmatpush1.msra.mxu0 0.0
        %1564 = vmatprep.subr.mxu0 0.0
        %1565 = vmatpush1.msra.mxu0 0.0
        %1566 = vmatprep.mubr.f32.mxu0 0.0
        %1567 = vmatmul.mubr.f32.gmra.mrb[0].mxu0 %v1464
        %v1568 = vpop.f32.mrb[0].mxu0
        %v1569 = vadd.f32 %v1501, %v1568
        %v1570 = vpop.f32.mrb[0].mxu0
        %1571 = vmatprep.mubr.f32.mxu0 0.0
        %1572 = vmatmul.mubr.f32.gmra.mrb[0].mxu0 %v1465
        %v1573 = vpop.f32.mrb[0].mxu0
        %v1574 = vadd.f32 %v1501, %v1573
        %v1575 = vpop.f32.mrb[0].mxu0
        %1576 = vmatprep.mubr.f32.mxu0 0.0
        %1577 = vmatmul.mubr.f32.gmra.mrb[0].mxu0 %v1466
        %v1578 = vpop.f32.mrb[0].mxu0
        %v1579 = vadd.f32 %v1501, %v1578
        %v1580 = vpop.f32.mrb[0].mxu0
        %1581 = vmatprep.mubr.f32.mxu0 0.0
        %1582 = vmatmul.mubr.f32.gmra.mrb[0].mxu0 %v1467
        %v1583 = vpop.f32.mrb[0].mxu0
        %v1584 = vadd.f32 %v1501, %v1583
        %v1585 = vpop.f32.mrb[0].mxu0
        %1586 = vmatprep.mubr.f32.mxu0 0.0
        %1587 = vmatmul.mubr.f32.gmra.mrb[0].mxu0 %v1468
        %v1588 = vpop.f32.mrb[0].mxu0
        %v1589 = vadd.f32 %v1501, %v1588
        %v1590 = vpop.f32.mrb[0].mxu0
        %1591 = vmatprep.mubr.f32.mxu0 0.0
        %1592 = vmatmul.mubr.f32.gmra.mrb[0].mxu0 %v1469
        %v1593 = vpop.f32.mrb[0].mxu0
        %v1594 = vadd.f32 %v1501, %v1593
        %v1595 = vpop.f32.mrb[0].mxu0
        %1596 = vmatprep.mubr.f32.mxu0 0.0
        %1597 = vmatmul.mubr.f32.gmra.mrb[0].mxu0 %v1470
        %v1598 = vpop.f32.mrb[0].mxu0
        %v1599 = vadd.f32 %v1501, %v1598
        %v1600 = vpop.f32.mrb[0].mxu0
        %1601 = vmatprep.mubr.f32.mxu0 0.0
        %1602 = vmatmul.mubr.f32.gmra.mrb[0].mxu0 %v1471
        %v1603 = vpop.f32.mrb[0].mxu0
        %v1604 = vadd.f32 %v1501, %v1603
        %v1605 = vpop.f32.mrb[0].mxu0
        %1606 = vdwg.mxu0
        %1607 = vmatprep.subr.mxu0 0.0
        %1608 = vmatpush1.msra.mxu0 %v1481
        %1609 = vmatprep.subr.mxu0 0.0
        %1610 = vmatpush1.msra.mxu0 %v1482
        %1611 = vmatprep.subr.mxu0 0.0
        %1612 = vmatpush1.msra.mxu0 %v1483
        %1613 = vmatprep.subr.mxu0 0.0
        %1614 = vmatpush1.msra.mxu0 %v1484
        %1615 = vmatprep.subr.mxu0 0.0
        %1616 = vmatpush1.msra.mxu0 %v1485
        %1617 = vmatprep.subr.mxu0 0.0
        %1618 = vmatpush1.msra.mxu0 %v1486
        %1619 = vmatprep.subr.mxu0 0.0
        %1620 = vmatpush1.msra.mxu0 %v1487
        %1621 = vmatprep.subr.mxu0 0.0
        %1622 = vmatpush1.msra.mxu0 %v1488
        %1623 = vmatprep.subr.mxu0 0.0
        %1624 = vmatpush1.msra.mxu0 %v1489
        %1625 = vmatprep.subr.mxu0 0.0
        %1626 = vmatpush1.msra.mxu0 %v1490
        %1627 = vmatprep.subr.mxu0 0.0
        %1628 = vmatpush1.msra.mxu0 %v1491
        %1629 = vmatprep.subr.mxu0 0.0
        %1630 = vmatpush1.msra.mxu0 %v1492
        %1631 = vmatprep.subr.mxu0 0.0
        %1632 = vmatpush1.msra.mxu0 %v1493
        %1633 = vmatprep.subr.mxu0 0.0
        %1634 = vmatpush1.msra.mxu0 %v1494
        %1635 = vmatprep.subr.mxu0 0.0
        %1636 = vmatpush1.msra.mxu0 %v1495
        %1637 = vmatprep.subr.mxu0 0.0
        %1638 = vmatpush1.msra.mxu0 %v1496
        %1639 = vmatprep.subr.mxu0 0.0
        %1640 = vmatpush1.msra.mxu0 0.0
        %1641 = vmatprep.subr.mxu0 0.0
        %1642 = vmatpush1.msra.mxu0 0.0
        %1643 = vmatprep.subr.mxu0 0.0
        %1644 = vmatpush1.msra.mxu0 0.0
        %1645 = vmatprep.subr.mxu0 0.0
        %1646 = vmatpush1.msra.mxu0 0.0
        %1647 = vmatprep.subr.mxu0 0.0
        %1648 = vmatpush1.msra.mxu0 0.0
        %1649 = vmatprep.subr.mxu0 0.0
        %1650 = vmatpush1.msra.mxu0 0.0
        %1651 = vmatprep.subr.mxu0 0.0
        %1652 = vmatpush1.msra.mxu0 0.0
        %1653 = vmatprep.subr.mxu0 0.0
        %1654 = vmatpush1.msra.mxu0 0.0
        %1655 = vmatprep.subr.mxu0 0.0
        %1656 = vmatpush1.msra.mxu0 0.0
        %1657 = vmatprep.subr.mxu0 0.0
        %1658 = vmatpush1.msra.mxu0 0.0
        %1659 = vmatprep.subr.mxu0 0.0
        %1660 = vmatpush1.msra.mxu0 0.0
        %1661 = vmatprep.subr.mxu0 0.0
        %1662 = vmatpush1.msra.mxu0 0.0
        %1663 = vmatprep.subr.mxu0 0.0
        %1664 = vmatpush1.msra.mxu0 0.0
        %1665 = vmatprep.subr.mxu0 0.0
        %1666 = vmatpush1.msra.mxu0 0.0
        %1667 = vmatprep.subr.mxu0 0.0
        %1668 = vmatpush1.msra.mxu0 0.0
        %1669 = vmatprep.subr.mxu0 0.0
        %1670 = vmatpush1.msra.mxu0 0.0
        %1671 = vmatprep.mubr.f32.mxu0 0.0
        %1672 = vmatmul.mubr.f32.gmra.mrb[0].mxu0 %v1472
        %v1673 = vpop.f32.mrb[0].mxu0
        %v1674 = vadd.f32 %v1501, %v1673
        %v1675 = vpop.f32.mrb[0].mxu0
        %1676 = vmatprep.mubr.f32.mxu0 0.0
        %1677 = vmatmul.mubr.f32.gmra.mrb[0].mxu0 %v1473
        %v1678 = vpop.f32.mrb[0].mxu0
        %v1679 = vadd.f32 %v1501, %v1678
        %v1680 = vpop.f32.mrb[0].mxu0
        %1681 = vmatprep.mubr.f32.mxu0 0.0
        %1682 = vmatmul.mubr.f32.gmra.mrb[0].mxu0 %v1474
        %v1683 = vpop.f32.mrb[0].mxu0
        %v1684 = vadd.f32 %v1501, %v1683
        %v1685 = vpop.f32.mrb[0].mxu0
        %1686 = vmatprep.mubr.f32.mxu0 0.0
        %1687 = vmatmul.mubr.f32.gmra.mrb[0].mxu0 %v1475
        %v1688 = vpop.f32.mrb[0].mxu0
        %v1689 = vadd.f32 %v1501, %v1688
        %v1690 = vpop.f32.mrb[0].mxu0
        %1691 = vmatprep.mubr.f32.mxu0 0.0
        %1692 = vmatmul.mubr.f32.gmra.mrb[0].mxu0 %v1476
        %v1693 = vpop.f32.mrb[0].mxu0
        %v1694 = vadd.f32 %v1501, %v1693
        %v1695 = vpop.f32.mrb[0].mxu0
        %1696 = vmatprep.mubr.f32.mxu0 0.0
        %1697 = vmatmul.mubr.f32.gmra.mrb[0].mxu0 %v1477
        %v1698 = vpop.f32.mrb[0].mxu0
        %v1699 = vadd.f32 %v1501, %v1698
        %v1700 = vpop.f32.mrb[0].mxu0
        %1701 = vmatprep.mubr.f32.mxu0 0.0
        %1702 = vmatmul.mubr.f32.gmra.mrb[0].mxu0 %v1478
        %v1703 = vpop.f32.mrb[0].mxu0
        %v1704 = vadd.f32 %v1501, %v1703
        %v1705 = vpop.f32.mrb[0].mxu0
        %1706 = vmatprep.mubr.f32.mxu0 0.0
        %1707 = vmatmul.mubr.f32.gmra.mrb[0].mxu0 %v1479
        %v1708 = vpop.f32.mrb[0].mxu0
        %v1709 = vadd.f32 %v1501, %v1708
        %v1710 = vpop.f32.mrb[0].mxu0
        %1711 = vdwg.mxu0
        %v1712 = vtanh.pop %v1569
        %v1713 = vtanh.pop %v1574
        %v1714 = vtanh.pop %v1579
        %v1715 = vtanh.pop %v1584
        %v1716 = vtanh.pop %v1589
        %v1717 = vtanh.pop %v1594
        %v1718 = vtanh.pop %v1599
        %v1719 = vtanh.pop %v1604
        %v1720 = vtanh.pop %v1674
        %v1721 = vtanh.pop %v1679
        %v1722 = vtanh.pop %v1684
        %v1723 = vtanh.pop %v1689
        %v1724 = vtanh.pop %v1694
        %v1725 = vtanh.pop %v1699
        %v1726 = vtanh.pop %v1704
        %v1727 = vtanh.pop %v1709
        %s1728 = scalar_lea.vmem [#allocation2], 768
        %v1729 = vld [vmem:[%s1728] sm:$0xff]
        %v1730 = vld [vmem:[%s1728 + $0x8] sm:$0xff]
        %v1731 = vld [vmem:[%s1728 + $0x10] sm:$0xff]
        %v1732 = vld [vmem:[%s1728 + $0x18] sm:$0xff]
        %v1733 = vld [vmem:[%s1728 + $0x20] sm:$0xff]
        %v1734 = vld [vmem:[%s1728 + $0x28] sm:$0xff]
        %v1735 = vld [vmem:[%s1728 + $0x30] sm:$0xff]
        %v1736 = vld [vmem:[%s1728 + $0x38] sm:$0xff]
        %v1737 = vld [vmem:[%s1728 + $0x40] sm:$0xff]
        %v1738 = vld [vmem:[%s1728 + $0x48] sm:$0xff]
        %v1739 = vld [vmem:[%s1728 + $0x50] sm:$0xff]
        %v1740 = vld [vmem:[%s1728 + $0x58] sm:$0xff]
        %v1741 = vld [vmem:[%s1728 + $0x60] sm:$0xff]
        %v1742 = vld [vmem:[%s1728 + $0x68] sm:$0xff]
        %v1743 = vld [vmem:[%s1728 + $0x70] sm:$0xff]
        %v1744 = vld [vmem:[%s1728 + $0x78] sm:$0xff]
        %v1745 = vld [vmem:[%s2 + $0x6] sm:$0x1]
        %v1746 = vlaneseq
        %v1747 = vshrl.u32 %v1746, 7
        %v1748 = vsub.s32 0, %v1747
        %v1749 = vrot.slane %v1745, %v1748
        %1750 = vmatprep.subr.mxu0 0.0
        %1751 = vmatpush1.msra.mxu0 %v1729
        %1752 = vmatprep.subr.mxu0 0.0
        %1753 = vmatpush1.msra.mxu0 %v1730
        %1754 = vmatprep.subr.mxu0 0.0
        %1755 = vmatpush1.msra.mxu0 %v1731
        %1756 = vmatprep.subr.mxu0 0.0
        %1757 = vmatpush1.msra.mxu0 %v1732
        %1758 = vmatprep.subr.mxu0 0.0
        %1759 = vmatpush1.msra.mxu0 %v1733
        %1760 = vmatprep.subr.mxu0 0.0
        %1761 = vmatpush1.msra.mxu0 %v1734
        %1762 = vmatprep.subr.mxu0 0.0
        %1763 = vmatpush1.msra.mxu0 %v1735
        %1764 = vmatprep.subr.mxu0 0.0
        %1765 = vmatpush1.msra.mxu0 %v1736
        %1766 = vmatprep.subr.mxu0 0.0
        %1767 = vmatpush1.msra.mxu0 %v1737
        %1768 = vmatprep.subr.mxu0 0.0
        %1769 = vmatpush1.msra.mxu0 %v1738
        %1770 = vmatprep.subr.mxu0 0.0
        %1771 = vmatpush1.msra.mxu0 %v1739
        %1772 = vmatprep.subr.mxu0 0.0
        %1773 = vmatpush1.msra.mxu0 %v1740
        %1774 = vmatprep.subr.mxu0 0.0
        %1775 = vmatpush1.msra.mxu0 %v1741
        %1776 = vmatprep.subr.mxu0 0.0
        %1777 = vmatpush1.msra.mxu0 %v1742
        %1778 = vmatprep.subr.mxu0 0.0
        %1779 = vmatpush1.msra.mxu0 %v1743
        %1780 = vmatprep.subr.mxu0 0.0
        %1781 = vmatpush1.msra.mxu0 %v1744
        %1782 = vmatprep.subr.mxu0 0.0
        %1783 = vmatpush1.msra.mxu0 0.0
        %1784 = vmatprep.subr.mxu0 0.0
        %1785 = vmatpush1.msra.mxu0 0.0
        %1786 = vmatprep.subr.mxu0 0.0
        %1787 = vmatpush1.msra.mxu0 0.0
        %1788 = vmatprep.subr.mxu0 0.0
        %1789 = vmatpush1.msra.mxu0 0.0
        %1790 = vmatprep.subr.mxu0 0.0
        %1791 = vmatpush1.msra.mxu0 0.0
        %1792 = vmatprep.subr.mxu0 0.0
        %1793 = vmatpush1.msra.mxu0 0.0
        %1794 = vmatprep.subr.mxu0 0.0
        %1795 = vmatpush1.msra.mxu0 0.0
        %1796 = vmatprep.subr.mxu0 0.0
        %1797 = vmatpush1.msra.mxu0 0.0
        %1798 = vmatprep.subr.mxu0 0.0
        %1799 = vmatpush1.msra.mxu0 0.0
        %1800 = vmatprep.subr.mxu0 0.0
        %1801 = vmatpush1.msra.mxu0 0.0
        %1802 = vmatprep.subr.mxu0 0.0
        %1803 = vmatpush1.msra.mxu0 0.0
        %1804 = vmatprep.subr.mxu0 0.0
        %1805 = vmatpush1.msra.mxu0 0.0
        %1806 = vmatprep.subr.mxu0 0.0
        %1807 = vmatpush1.msra.mxu0 0.0
        %1808 = vmatprep.subr.mxu0 0.0
        %1809 = vmatpush1.msra.mxu0 0.0
        %1810 = vmatprep.subr.mxu0 0.0
        %1811 = vmatpush1.msra.mxu0 0.0
        %1812 = vmatprep.subr.mxu0 0.0
        %1813 = vmatpush1.msra.mxu0 0.0
        %1814 = vmatprep.mubr.f32.mxu0 0.0
        %1815 = vmatmul.mubr.f32.gmra.mrb[0].mxu0 %v1712
        %v1816 = vpop.f32.mrb[0].mxu0
        %v1817 = vadd.f32 %v1749, %v1816
        %v1818 = vpop.f32.mrb[0].mxu0
        %1819 = vmatprep.mubr.f32.mxu0 0.0
        %1820 = vmatmul.mubr.f32.gmra.mrb[0].mxu0 %v1713
        %v1821 = vpop.f32.mrb[0].mxu0
        %v1822 = vadd.f32 %v1749, %v1821
        %v1823 = vpop.f32.mrb[0].mxu0
        %1824 = vmatprep.mubr.f32.mxu0 0.0
        %1825 = vmatmul.mubr.f32.gmra.mrb[0].mxu0 %v1714
        %v1826 = vpop.f32.mrb[0].mxu0
        %v1827 = vadd.f32 %v1749, %v1826
        %v1828 = vpop.f32.mrb[0].mxu0
        %1829 = vmatprep.mubr.f32.mxu0 0.0
        %1830 = vmatmul.mubr.f32.gmra.mrb[0].mxu0 %v1715
        %v1831 = vpop.f32.mrb[0].mxu0
        %v1832 = vadd.f32 %v1749, %v1831
        %v1833 = vpop.f32.mrb[0].mxu0
        %1834 = vmatprep.mubr.f32.mxu0 0.0
        %1835 = vmatmul.mubr.f32.gmra.mrb[0].mxu0 %v1716
        %v1836 = vpop.f32.mrb[0].mxu0
        %v1837 = vadd.f32 %v1749, %v1836
        %v1838 = vpop.f32.mrb[0].mxu0
        %1839 = vmatprep.mubr.f32.mxu0 0.0
        %1840 = vmatmul.mubr.f32.gmra.mrb[0].mxu0 %v1717
        %v1841 = vpop.f32.mrb[0].mxu0
        %v1842 = vadd.f32 %v1749, %v1841
        %v1843 = vpop.f32.mrb[0].mxu0
        %1844 = vmatprep.mubr.f32.mxu0 0.0
        %1845 = vmatmul.mubr.f32.gmra.mrb[0].mxu0 %v1718
        %v1846 = vpop.f32.mrb[0].mxu0
        %v1847 = vadd.f32 %v1749, %v1846
        %v1848 = vpop.f32.mrb[0].mxu0
        %1849 = vmatprep.mubr.f32.mxu0 0.0
        %1850 = vmatmul.mubr.f32.gmra.mrb[0].mxu0 %v1719
        %v1851 = vpop.f32.mrb[0].mxu0
        %v1852 = vadd.f32 %v1749, %v1851
        %v1853 = vpop.f32.mrb[0].mxu0
        %1854 = vdwg.mxu0
        %1855 = vmatprep.subr.mxu0 0.0
        %1856 = vmatpush1.msra.mxu0 %v1729
        %1857 = vmatprep.subr.mxu0 0.0
        %1858 = vmatpush1.msra.mxu0 %v1730
        %1859 = vmatprep.subr.mxu0 0.0
        %1860 = vmatpush1.msra.mxu0 %v1731
        %1861 = vmatprep.subr.mxu0 0.0
        %1862 = vmatpush1.msra.mxu0 %v1732
        %1863 = vmatprep.subr.mxu0 0.0
        %1864 = vmatpush1.msra.mxu0 %v1733
        %1865 = vmatprep.subr.mxu0 0.0
        %1866 = vmatpush1.msra.mxu0 %v1734
        %1867 = vmatprep.subr.mxu0 0.0
        %1868 = vmatpush1.msra.mxu0 %v1735
        %1869 = vmatprep.subr.mxu0 0.0
        %1870 = vmatpush1.msra.mxu0 %v1736
        %1871 = vmatprep.subr.mxu0 0.0
        %1872 = vmatpush1.msra.mxu0 %v1737
        %1873 = vmatprep.subr.mxu0 0.0
        %1874 = vmatpush1.msra.mxu0 %v1738
        %1875 = vmatprep.subr.mxu0 0.0
        %1876 = vmatpush1.msra.mxu0 %v1739
        %1877 = vmatprep.subr.mxu0 0.0
        %1878 = vmatpush1.msra.mxu0 %v1740
        %1879 = vmatprep.subr.mxu0 0.0
        %1880 = vmatpush1.msra.mxu0 %v1741
        %1881 = vmatprep.subr.mxu0 0.0
        %1882 = vmatpush1.msra.mxu0 %v1742
        %1883 = vmatprep.subr.mxu0 0.0
        %1884 = vmatpush1.msra.mxu0 %v1743
        %1885 = vmatprep.subr.mxu0 0.0
        %1886 = vmatpush1.msra.mxu0 %v1744
        %1887 = vmatprep.subr.mxu0 0.0
        %1888 = vmatpush1.msra.mxu0 0.0
        %1889 = vmatprep.subr.mxu0 0.0
        %1890 = vmatpush1.msra.mxu0 0.0
        %1891 = vmatprep.subr.mxu0 0.0
        %1892 = vmatpush1.msra.mxu0 0.0
        %1893 = vmatprep.subr.mxu0 0.0
        %1894 = vmatpush1.msra.mxu0 0.0
        %1895 = vmatprep.subr.mxu0 0.0
        %1896 = vmatpush1.msra.mxu0 0.0
        %1897 = vmatprep.subr.mxu0 0.0
        %1898 = vmatpush1.msra.mxu0 0.0
        %1899 = vmatprep.subr.mxu0 0.0
        %1900 = vmatpush1.msra.mxu0 0.0
        %1901 = vmatprep.subr.mxu0 0.0
        %1902 = vmatpush1.msra.mxu0 0.0
        %1903 = vmatprep.subr.mxu0 0.0
        %1904 = vmatpush1.msra.mxu0 0.0
        %1905 = vmatprep.subr.mxu0 0.0
        %1906 = vmatpush1.msra.mxu0 0.0
        %1907 = vmatprep.subr.mxu0 0.0
        %1908 = vmatpush1.msra.mxu0 0.0
        %1909 = vmatprep.subr.mxu0 0.0
        %1910 = vmatpush1.msra.mxu0 0.0
        %1911 = vmatprep.subr.mxu0 0.0
        %1912 = vmatpush1.msra.mxu0 0.0
        %1913 = vmatprep.subr.mxu0 0.0
        %1914 = vmatpush1.msra.mxu0 0.0
        %1915 = vmatprep.subr.mxu0 0.0
        %1916 = vmatpush1.msra.mxu0 0.0
        %1917 = vmatprep.subr.mxu0 0.0
        %1918 = vmatpush1.msra.mxu0 0.0
        %1919 = vmatprep.mubr.f32.mxu0 0.0
        %1920 = vmatmul.mubr.f32.gmra.mrb[0].mxu0 %v1720
        %v1921 = vpop.f32.mrb[0].mxu0
        %v1922 = vadd.f32 %v1749, %v1921
        %v1923 = vpop.f32.mrb[0].mxu0
        %1924 = vmatprep.mubr.f32.mxu0 0.0
        %1925 = vmatmul.mubr.f32.gmra.mrb[0].mxu0 %v1721
        %v1926 = vpop.f32.mrb[0].mxu0
        %v1927 = vadd.f32 %v1749, %v1926
        %v1928 = vpop.f32.mrb[0].mxu0
        %1929 = vmatprep.mubr.f32.mxu0 0.0
        %1930 = vmatmul.mubr.f32.gmra.mrb[0].mxu0 %v1722
        %v1931 = vpop.f32.mrb[0].mxu0
        %v1932 = vadd.f32 %v1749, %v1931
        %v1933 = vpop.f32.mrb[0].mxu0
        %1934 = vmatprep.mubr.f32.mxu0 0.0
        %1935 = vmatmul.mubr.f32.gmra.mrb[0].mxu0 %v1723
        %v1936 = vpop.f32.mrb[0].mxu0
        %v1937 = vadd.f32 %v1749, %v1936
        %v1938 = vpop.f32.mrb[0].mxu0
        %1939 = vmatprep.mubr.f32.mxu0 0.0
        %1940 = vmatmul.mubr.f32.gmra.mrb[0].mxu0 %v1724
        %v1941 = vpop.f32.mrb[0].mxu0
        %v1942 = vadd.f32 %v1749, %v1941
        %v1943 = vpop.f32.mrb[0].mxu0
        %1944 = vmatprep.mubr.f32.mxu0 0.0
        %1945 = vmatmul.mubr.f32.gmra.mrb[0].mxu0 %v1725
        %v1946 = vpop.f32.mrb[0].mxu0
        %v1947 = vadd.f32 %v1749, %v1946
        %v1948 = vpop.f32.mrb[0].mxu0
        %1949 = vmatprep.mubr.f32.mxu0 0.0
        %1950 = vmatmul.mubr.f32.gmra.mrb[0].mxu0 %v1726
        %v1951 = vpop.f32.mrb[0].mxu0
        %v1952 = vadd.f32 %v1749, %v1951
        %v1953 = vpop.f32.mrb[0].mxu0
        %1954 = vmatprep.mubr.f32.mxu0 0.0
        %1955 = vmatmul.mubr.f32.gmra.mrb[0].mxu0 %v1727
        %v1956 = vpop.f32.mrb[0].mxu0
        %v1957 = vadd.f32 %v1749, %v1956
        %v1958 = vpop.f32.mrb[0].mxu0
        %1959 = vdwg.mxu0
        %v1960 = vtanh.pop %v1817
        %v1961 = vtanh.pop %v1822
        %v1962 = vtanh.pop %v1827
        %v1963 = vtanh.pop %v1832
        %v1964 = vtanh.pop %v1837
        %v1965 = vtanh.pop %v1842
        %v1966 = vtanh.pop %v1847
        %v1967 = vtanh.pop %v1852
        %v1968 = vtanh.pop %v1922
        %v1969 = vtanh.pop %v1927
        %v1970 = vtanh.pop %v1932
        %v1971 = vtanh.pop %v1937
        %v1972 = vtanh.pop %v1942
        %v1973 = vtanh.pop %v1947
        %v1974 = vtanh.pop %v1952
        %v1975 = vtanh.pop %v1957
        %s1976 = scalar_lea.vmem [#allocation2], 896
        %v1977 = vld [vmem:[%s1976] sm:$0xff]
        %v1978 = vld [vmem:[%s1976 + $0x8] sm:$0xff]
        %v1979 = vld [vmem:[%s1976 + $0x10] sm:$0xff]
        %v1980 = vld [vmem:[%s1976 + $0x18] sm:$0xff]
        %v1981 = vld [vmem:[%s1976 + $0x20] sm:$0xff]
        %v1982 = vld [vmem:[%s1976 + $0x28] sm:$0xff]
        %v1983 = vld [vmem:[%s1976 + $0x30] sm:$0xff]
        %v1984 = vld [vmem:[%s1976 + $0x38] sm:$0xff]
        %v1985 = vld [vmem:[%s1976 + $0x40] sm:$0xff]
        %v1986 = vld [vmem:[%s1976 + $0x48] sm:$0xff]
        %v1987 = vld [vmem:[%s1976 + $0x50] sm:$0xff]
        %v1988 = vld [vmem:[%s1976 + $0x58] sm:$0xff]
        %v1989 = vld [vmem:[%s1976 + $0x60] sm:$0xff]
        %v1990 = vld [vmem:[%s1976 + $0x68] sm:$0xff]
        %v1991 = vld [vmem:[%s1976 + $0x70] sm:$0xff]
        %v1992 = vld [vmem:[%s1976 + $0x78] sm:$0xff]
        %v1993 = vld [vmem:[%s2 + $0x7] sm:$0x1]
        %v1994 = vlaneseq
        %v1995 = vshrl.u32 %v1994, 7
        %v1996 = vsub.s32 0, %v1995
        %v1997 = vrot.slane %v1993, %v1996
        %1998 = vmatprep.subr.mxu0 0.0
        %1999 = vmatpush1.msra.mxu0 %v1977
        %2000 = vmatprep.subr.mxu0 0.0
        %2001 = vmatpush1.msra.mxu0 %v1978
        %2002 = vmatprep.subr.mxu0 0.0
        %2003 = vmatpush1.msra.mxu0 %v1979
        %2004 = vmatprep.subr.mxu0 0.0
        %2005 = vmatpush1.msra.mxu0 %v1980
        %2006 = vmatprep.subr.mxu0 0.0
        %2007 = vmatpush1.msra.mxu0 %v1981
        %2008 = vmatprep.subr.mxu0 0.0
        %2009 = vmatpush1.msra.mxu0 %v1982
        %2010 = vmatprep.subr.mxu0 0.0
        %2011 = vmatpush1.msra.mxu0 %v1983
        %2012 = vmatprep.subr.mxu0 0.0
        %2013 = vmatpush1.msra.mxu0 %v1984
        %2014 = vmatprep.subr.mxu0 0.0
        %2015 = vmatpush1.msra.mxu0 %v1985
        %2016 = vmatprep.subr.mxu0 0.0
        %2017 = vmatpush1.msra.mxu0 %v1986
        %2018 = vmatprep.subr.mxu0 0.0
        %2019 = vmatpush1.msra.mxu0 %v1987
        %2020 = vmatprep.subr.mxu0 0.0
        %2021 = vmatpush1.msra.mxu0 %v1988
        %2022 = vmatprep.subr.mxu0 0.0
        %2023 = vmatpush1.msra.mxu0 %v1989
        %2024 = vmatprep.subr.mxu0 0.0
        %2025 = vmatpush1.msra.mxu0 %v1990
        %2026 = vmatprep.subr.mxu0 0.0
        %2027 = vmatpush1.msra.mxu0 %v1991
        %2028 = vmatprep.subr.mxu0 0.0
        %2029 = vmatpush1.msra.mxu0 %v1992
        %2030 = vmatprep.subr.mxu0 0.0
        %2031 = vmatpush1.msra.mxu0 0.0
        %2032 = vmatprep.subr.mxu0 0.0
        %2033 = vmatpush1.msra.mxu0 0.0
        %2034 = vmatprep.subr.mxu0 0.0
        %2035 = vmatpush1.msra.mxu0 0.0
        %2036 = vmatprep.subr.mxu0 0.0
        %2037 = vmatpush1.msra.mxu0 0.0
        %2038 = vmatprep.subr.mxu0 0.0
        %2039 = vmatpush1.msra.mxu0 0.0
        %2040 = vmatprep.subr.mxu0 0.0
        %2041 = vmatpush1.msra.mxu0 0.0
        %2042 = vmatprep.subr.mxu0 0.0
        %2043 = vmatpush1.msra.mxu0 0.0
        %2044 = vmatprep.subr.mxu0 0.0
        %2045 = vmatpush1.msra.mxu0 0.0
        %2046 = vmatprep.subr.mxu0 0.0
        %2047 = vmatpush1.msra.mxu0 0.0
        %2048 = vmatprep.subr.mxu0 0.0
        %2049 = vmatpush1.msra.mxu0 0.0
        %2050 = vmatprep.subr.mxu0 0.0
        %2051 = vmatpush1.msra.mxu0 0.0
        %2052 = vmatprep.subr.mxu0 0.0
        %2053 = vmatpush1.msra.mxu0 0.0
        %2054 = vmatprep.subr.mxu0 0.0
        %2055 = vmatpush1.msra.mxu0 0.0
        %2056 = vmatprep.subr.mxu0 0.0
        %2057 = vmatpush1.msra.mxu0 0.0
        %2058 = vmatprep.subr.mxu0 0.0
        %2059 = vmatpush1.msra.mxu0 0.0
        %2060 = vmatprep.subr.mxu0 0.0
        %2061 = vmatpush1.msra.mxu0 0.0
        %2062 = vmatprep.mubr.f32.mxu0 0.0
        %2063 = vmatmul.mubr.f32.gmra.mrb[0].mxu0 %v1960
        %v2064 = vpop.f32.mrb[0].mxu0
        %v2065 = vadd.f32 %v1997, %v2064
        %v2066 = vpop.f32.mrb[0].mxu0
        %2067 = vmatprep.mubr.f32.mxu0 0.0
        %2068 = vmatmul.mubr.f32.gmra.mrb[0].mxu0 %v1961
        %v2069 = vpop.f32.mrb[0].mxu0
        %v2070 = vadd.f32 %v1997, %v2069
        %v2071 = vpop.f32.mrb[0].mxu0
        %2072 = vmatprep.mubr.f32.mxu0 0.0
        %2073 = vmatmul.mubr.f32.gmra.mrb[0].mxu0 %v1962
        %v2074 = vpop.f32.mrb[0].mxu0
        %v2075 = vadd.f32 %v1997, %v2074
        %v2076 = vpop.f32.mrb[0].mxu0
        %2077 = vmatprep.mubr.f32.mxu0 0.0
        %2078 = vmatmul.mubr.f32.gmra.mrb[0].mxu0 %v1963
        %v2079 = vpop.f32.mrb[0].mxu0
        %v2080 = vadd.f32 %v1997, %v2079
        %v2081 = vpop.f32.mrb[0].mxu0
        %2082 = vmatprep.mubr.f32.mxu0 0.0
        %2083 = vmatmul.mubr.f32.gmra.mrb[0].mxu0 %v1964
        %v2084 = vpop.f32.mrb[0].mxu0
        %v2085 = vadd.f32 %v1997, %v2084
        %v2086 = vpop.f32.mrb[0].mxu0
        %2087 = vmatprep.mubr.f32.mxu0 0.0
        %2088 = vmatmul.mubr.f32.gmra.mrb[0].mxu0 %v1965
        %v2089 = vpop.f32.mrb[0].mxu0
        %v2090 = vadd.f32 %v1997, %v2089
        %v2091 = vpop.f32.mrb[0].mxu0
        %2092 = vmatprep.mubr.f32.mxu0 0.0
        %2093 = vmatmul.mubr.f32.gmra.mrb[0].mxu0 %v1966
        %v2094 = vpop.f32.mrb[0].mxu0
        %v2095 = vadd.f32 %v1997, %v2094
        %v2096 = vpop.f32.mrb[0].mxu0
        %2097 = vmatprep.mubr.f32.mxu0 0.0
        %2098 = vmatmul.mubr.f32.gmra.mrb[0].mxu0 %v1967
        %v2099 = vpop.f32.mrb[0].mxu0
        %v2100 = vadd.f32 %v1997, %v2099
        %v2101 = vpop.f32.mrb[0].mxu0
        %2102 = vdwg.mxu0
        %2103 = vst [vmem:[%s187] sm:$0xff] %v2065
        %2104 = vst [vmem:[%s187 + $0x8] sm:$0xff] %v2070
        %2105 = vst [vmem:[%s187 + $0x10] sm:$0xff] %v2075
        %2106 = vst [vmem:[%s187 + $0x18] sm:$0xff] %v2080
        %2107 = vst [vmem:[%s187 + $0x20] sm:$0xff] %v2085
        %2108 = vst [vmem:[%s187 + $0x28] sm:$0xff] %v2090
        %2109 = vst [vmem:[%s187 + $0x30] sm:$0xff] %v2095
        %2110 = vst [vmem:[%s187 + $0x38] sm:$0xff] %v2100
        %2111 = vmatprep.subr.mxu0 0.0
        %2112 = vmatpush1.msra.mxu0 %v1977
        %2113 = vmatprep.subr.mxu0 0.0
        %2114 = vmatpush1.msra.mxu0 %v1978
        %2115 = vmatprep.subr.mxu0 0.0
        %2116 = vmatpush1.msra.mxu0 %v1979
        %2117 = vmatprep.subr.mxu0 0.0
        %2118 = vmatpush1.msra.mxu0 %v1980
        %2119 = vmatprep.subr.mxu0 0.0
        %2120 = vmatpush1.msra.mxu0 %v1981
        %2121 = vmatprep.subr.mxu0 0.0
        %2122 = vmatpush1.msra.mxu0 %v1982
        %2123 = vmatprep.subr.mxu0 0.0
        %2124 = vmatpush1.msra.mxu0 %v1983
        %2125 = vmatprep.subr.mxu0 0.0
        %2126 = vmatpush1.msra.mxu0 %v1984
        %2127 = vmatprep.subr.mxu0 0.0
        %2128 = vmatpush1.msra.mxu0 %v1985
        %2129 = vmatprep.subr.mxu0 0.0
        %2130 = vmatpush1.msra.mxu0 %v1986
        %2131 = vmatprep.subr.mxu0 0.0
        %2132 = vmatpush1.msra.mxu0 %v1987
        %2133 = vmatprep.subr.mxu0 0.0
        %2134 = vmatpush1.msra.mxu0 %v1988
        %2135 = vmatprep.subr.mxu0 0.0
        %2136 = vmatpush1.msra.mxu0 %v1989
        %2137 = vmatprep.subr.mxu0 0.0
        %2138 = vmatpush1.msra.mxu0 %v1990
        %2139 = vmatprep.subr.mxu0 0.0
        %2140 = vmatpush1.msra.mxu0 %v1991
        %2141 = vmatprep.subr.mxu0 0.0
        %2142 = vmatpush1.msra.mxu0 %v1992
        %2143 = vmatprep.subr.mxu0 0.0
        %2144 = vmatpush1.msra.mxu0 0.0
        %2145 = vmatprep.subr.mxu0 0.0
        %2146 = vmatpush1.msra.mxu0 0.0
        %2147 = vmatprep.subr.mxu0 0.0
        %2148 = vmatpush1.msra.mxu0 0.0
        %2149 = vmatprep.subr.mxu0 0.0
        %2150 = vmatpush1.msra.mxu0 0.0
        %2151 = vmatprep.subr.mxu0 0.0
        %2152 = vmatpush1.msra.mxu0 0.0
        %2153 = vmatprep.subr.mxu0 0.0
        %2154 = vmatpush1.msra.mxu0 0.0
        %2155 = vmatprep.subr.mxu0 0.0
        %2156 = vmatpush1.msra.mxu0 0.0
        %2157 = vmatprep.subr.mxu0 0.0
        %2158 = vmatpush1.msra.mxu0 0.0
        %2159 = vmatprep.subr.mxu0 0.0
        %2160 = vmatpush1.msra.mxu0 0.0
        %2161 = vmatprep.subr.mxu0 0.0
        %2162 = vmatpush1.msra.mxu0 0.0
        %2163 = vmatprep.subr.mxu0 0.0
        %2164 = vmatpush1.msra.mxu0 0.0
        %2165 = vmatprep.subr.mxu0 0.0
        %2166 = vmatpush1.msra.mxu0 0.0
        %2167 = vmatprep.subr.mxu0 0.0
        %2168 = vmatpush1.msra.mxu0 0.0
        %2169 = vmatprep.subr.mxu0 0.0
        %2170 = vmatpush1.msra.mxu0 0.0
        %2171 = vmatprep.subr.mxu0 0.0
        %2172 = vmatpush1.msra.mxu0 0.0
        %2173 = vmatprep.subr.mxu0 0.0
        %2174 = vmatpush1.msra.mxu0 0.0
        %2175 = vmatprep.mubr.f32.mxu0 0.0
        %2176 = vmatmul.mubr.f32.gmra.mrb[0].mxu0 %v1968
        %v2177 = vpop.f32.mrb[0].mxu0
        %v2178 = vadd.f32 %v1997, %v2177
        %v2179 = vpop.f32.mrb[0].mxu0
        %2180 = vmatprep.mubr.f32.mxu0 0.0
        %2181 = vmatmul.mubr.f32.gmra.mrb[0].mxu0 %v1969
        %v2182 = vpop.f32.mrb[0].mxu0
        %v2183 = vadd.f32 %v1997, %v2182
        %v2184 = vpop.f32.mrb[0].mxu0
        %2185 = vmatprep.mubr.f32.mxu0 0.0
        %2186 = vmatmul.mubr.f32.gmra.mrb[0].mxu0 %v1970
        %v2187 = vpop.f32.mrb[0].mxu0
        %v2188 = vadd.f32 %v1997, %v2187
        %v2189 = vpop.f32.mrb[0].mxu0
        %2190 = vmatprep.mubr.f32.mxu0 0.0
        %2191 = vmatmul.mubr.f32.gmra.mrb[0].mxu0 %v1971
        %v2192 = vpop.f32.mrb[0].mxu0
        %v2193 = vadd.f32 %v1997, %v2192
        %v2194 = vpop.f32.mrb[0].mxu0
        %2195 = vmatprep.mubr.f32.mxu0 0.0
        %2196 = vmatmul.mubr.f32.gmra.mrb[0].mxu0 %v1972
        %v2197 = vpop.f32.mrb[0].mxu0
        %v2198 = vadd.f32 %v1997, %v2197
        %v2199 = vpop.f32.mrb[0].mxu0
        %2200 = vmatprep.mubr.f32.mxu0 0.0
        %2201 = vmatmul.mubr.f32.gmra.mrb[0].mxu0 %v1973
        %v2202 = vpop.f32.mrb[0].mxu0
        %v2203 = vadd.f32 %v1997, %v2202
        %v2204 = vpop.f32.mrb[0].mxu0
        %2205 = vmatprep.mubr.f32.mxu0 0.0
        %2206 = vmatmul.mubr.f32.gmra.mrb[0].mxu0 %v1974
        %v2207 = vpop.f32.mrb[0].mxu0
        %v2208 = vadd.f32 %v1997, %v2207
        %v2209 = vpop.f32.mrb[0].mxu0
        %2210 = vmatprep.mubr.f32.mxu0 0.0
        %2211 = vmatmul.mubr.f32.gmra.mrb[0].mxu0 %v1975
        %v2212 = vpop.f32.mrb[0].mxu0
        %v2213 = vadd.f32 %v1997, %v2212
        %v2214 = vpop.f32.mrb[0].mxu0
        %2215 = vdwg.mxu0
        %s2216 = scalar_lea.vmem %s187, 64
        %2217 = vst [vmem:[%s2216] sm:$0xff] %v2178
        %2218 = vst [vmem:[%s2216 + $0x8] sm:$0xff] %v2183
        %2219 = vst [vmem:[%s2216 + $0x10] sm:$0xff] %v2188
        %2220 = vst [vmem:[%s2216 + $0x18] sm:$0xff] %v2193
        %2221 = vst [vmem:[%s2216 + $0x20] sm:$0xff] %v2198
        %2222 = vst [vmem:[%s2216 + $0x28] sm:$0xff] %v2203
        %2223 = vst [vmem:[%s2216 + $0x30] sm:$0xff] %v2208
        %2224 = vst [vmem:[%s2216 + $0x38] sm:$0xff] %v2213
        %s2225 = smul.u32 16, %s15
        %p2226 = scmp.lt.s32.totalorder %s2225, 31
        %s2227 = scalar_select %p2226, %s2225, 31
        %s2228 = smul.addr %s2227, 8
        %s2229 = scalar_lea.vmem %s3, %s2228
        // Predicated region
        $region37: #{pinn_forward.1} parent=31 // pred_check
          %p2230 = pneg %p101
        $region38: #{pinn_forward.1} parent=31 // pred_check_branch
          %2232 = sbr.rel (%p2230) target = $region40
        $region39: #{pinn_forward.1} parent=31 // pred_region
          %s2233 = smul.u32 16, %s15
        $region40: #{pinn_forward.1} parent=31 // pred_fallthru
          _
      $region32: #{pinn_forward.1} parent=5 // pred_fallthru
        _
      %p2234 = scmp.le.s32.totalorder 2, %s10
      // Predicated region
      $region41: #{pinn_forward.1} parent=5 // pred_check
        %p2235 = pneg %p2234
      $region42: #{pinn_forward.1} parent=5 // pred_check_branch
        %2237 = sbr.rel (%p2235) target = $region44
      $region43: #{pinn_forward.1} parent=5 // pred_region
        %s2238 = ssub.s32 %s10, 2
        // Predicated region
        $region45: #{pinn_forward.1} parent=43 // pred_check
          %p2239 = pneg %p107
        $region46: #{pinn_forward.1} parent=43 // pred_check_branch
          %2241 = sbr.rel (%p2239) target = $region48
        $region47: #{pinn_forward.1} parent=43 // pred_region
          %s2242 = smul.u32 16, %s16
          %p2243 = scmp.lt.s32.totalorder %s2242, 31
          %s2244 = scalar_select %p2243, %s2242, 31
          %s2245 = smul.addr %s2244, 8
          %s2246 = scalar_lea.vmem %s3, %s2245
        $region48: #{pinn_forward.1} parent=43 // pred_fallthru
          _
      $region44: #{pinn_forward.1} parent=5 // pred_fallthru
        _
    $region6: #{pinn_forward.1} parent=1 // loop_footer
      %s14 = sadd.s32 1, %s10
    $region7: #{pinn_forward.1} parent=1 // loop_footer_branch
      %9 = sbr.rel target = $region3
    $region8: #{pinn_forward.1} parent=1 // loop_exit
      _
    %2247 = vsyncpa [#allocation3], 1
    %s2248 = scalar_lea.sflag [#allocation3], 1
    %2249 = vsyncpa %s2248, 1

</llo_original>
